<compile_context>
chip_gen: v5e
topology: v5e:2x2
jax: 0.10.0
libtpu: 0.0.40
codegen_flags: <defaults>
</compile_context>

<pallas_src>
import jax
import jax.numpy as jnp
from jax import lax
from jax.experimental import pallas as pl
from jax.experimental.pallas import tpu as pltpu


def gated_recurrent_kernel(
    p_ref, q_ref, wqq_ref,
    wpv_t_ref, wpv_b_ref, ws_row_ref, ws_b_ref,
    wg_t_ref, wg_b_ref, w_gru_ref, b_rz_ref, bih_n_ref, bhh_n_ref,
    out_ref,
    vp_ref,
):
    t = pl.program_id(0)
    B, T, H = p_ref.shape

    @pl.when(t == 0)
    def _init():
        vp_ref[...] = jnp.zeros_like(vp_ref)

    # ---- Hoisted once per grid step (shared by all T unrolled timesteps) ----
    q = q_ref[...].astype(jnp.float32)            # [B, Lq, H] context values
    wqq = wqq_ref[...].astype(jnp.float32)        # [B, Lq, H] wq(Q), precomputed
    wpv_t = wpv_t_ref[...]                        # [2H, H]  bf16
    wpv_b = wpv_b_ref[...]                        # [1, H]   f32 (wp_b + wv_b)
    ws_row3 = ws_row_ref[...][None]               # [1, 1, H] hoisted broadcast
    ws_b = ws_b_ref[...]                          # [1, 1]
    wg_t = wg_t_ref[...]                          # [2H, H]  bf16
    wg_b = wg_b_ref[...]                          # [1, H]
    w_gru = w_gru_ref[...]                        # [2H, 4H] bf16 fused GRU weight
    b_rz = b_rz_ref[...]                          # [1, 2H]  (b_ih + b_hh)[:2H]
    bih_n = bih_n_ref[...]                        # [1, H]
    bhh_n = bhh_n_ref[...]                        # [1, H]

    def step(j, vp):
        p = p_ref[:, pl.ds(j, 1), :][:, 0, :].astype(jnp.float32)      # [B, H]

        # --- AttentionLayer: attn = wq(Q) + wp(p) + wv(vp), fused K=2H ---
        pv = jnp.concatenate([p, vp], axis=-1).astype(jnp.bfloat16)    # [B, 2H]
        wpv = jnp.dot(pv, wpv_t, preferred_element_type=jnp.float32) + wpv_b
        attn = wqq + wpv[:, None, :]                                   # [B, Lq, H]

        # ws(tanh(attn)).squeeze(2) -> softmax over the Q-sequence axis
        s = jnp.sum(jnp.tanh(attn) * ws_row3, axis=2) + ws_b           # [B, Lq]
        s = s - jnp.max(s, axis=1, keepdims=True)
        e = jnp.exp(s)
        a = e * pl.reciprocal(jnp.sum(e, axis=1, keepdims=True), approx=True)

        # context c = bmm(a, Q)
        c = jnp.sum(a[:, :, None] * q, axis=1)                         # [B, H]

        # --- gate: g = sigmoid(wg(cat([p, c]))), fused K=2H matmul ---
        pc = jnp.concatenate([p, c], axis=-1).astype(jnp.bfloat16)     # [B, 2H]
        g = jax.nn.sigmoid(
            jnp.dot(pc, wg_t, preferred_element_type=jnp.float32) + wg_b)
        cg = g * c

        # --- GRUCell(cg, vp): one fused [B,2H]@[2H,4H] matmul; columns are
        #     (gi_rz + gh_rz, gi_n, gh_n).  PyTorch gate order (r, z, n). ---
        cv = jnp.concatenate([cg, vp], axis=-1).astype(jnp.bfloat16)   # [B, 2H]
        gru = jnp.dot(cv, w_gru, preferred_element_type=jnp.float32)   # [B, 4H]
        rz = jax.nn.sigmoid(gru[:, : 2 * H] + b_rz)
        r = rz[:, :H]
        z = rz[:, H: 2 * H]
        n = jnp.tanh(gru[:, 2 * H: 3 * H] + bih_n
                     + r * (gru[:, 3 * H: 4 * H] + bhh_n))
        h_new = (1.0 - z) * n + z * vp

        out_ref[:, pl.ds(j, 1), :] = h_new[:, None, :].astype(out_ref.dtype)
        return h_new

    # Unrolled time loop; vp carried as a value, VMEM touched once per chunk.
    vp_final = lax.fori_loop(0, T, step, vp_ref[...], unroll=True)
    vp_ref[...] = vp_final


def pack_params(prm):
    """Build fused / bf16 kernel parameters from raw (PyTorch-style) params."""
    H = prm["wp"].shape[0]
    f32, bf16 = jnp.float32, jnp.bfloat16

    # wq stays f32 -- used only in the wrapper-side wq(Q) precompute.
    wq_t = prm["wq"].T.astype(f32)
    wq_b = prm["wq_b"].reshape(1, H).astype(f32)

    # wp / wv fused along K (concat([p, vp]) @ wpv_t).
    wpv_t = jnp.concatenate([prm["wp"].T, prm["wv"].T], axis=0).astype(bf16)
    wpv_b = (prm["wp_b"] + prm["wv_b"]).reshape(1, H).astype(f32)

    ws_row = prm["ws"].reshape(1, H).astype(f32)
    ws_b = prm["ws_b"].reshape(1, 1).astype(f32)

    wg_t = prm["wg"].T.astype(bf16)                       # [2H, H]
    wg_b = prm["wg_b"].reshape(1, H).astype(f32)

    # GRU fused weight [2H, 4H]: columns (rz summed, gi_n, gh_n).
    wih_t = prm["w_ih"].T                                  # [H, 3H]
    whh_t = prm["w_hh"].T                                  # [H, 3H]
    zero = jnp.zeros((H, H), f32)
    w_gru = jnp.concatenate(
        [
            jnp.concatenate([wih_t[:, : 2 * H], wih_t[:, 2 * H:], zero], axis=1),
            jnp.concatenate([whh_t[:, : 2 * H], zero, whh_t[:, 2 * H:]], axis=1),
        ],
        axis=0,
    ).astype(bf16)                                        # [2H, 4H]
    b_rz = (prm["b_ih"][: 2 * H] + prm["b_hh"][: 2 * H]).reshape(1, 2 * H).astype(f32)
    bih_n = prm["b_ih"][2 * H:].reshape(1, H).astype(f32)
    bhh_n = prm["b_hh"][2 * H:].reshape(1, H).astype(f32)

    return dict(
        wq_t=wq_t, wq_b=wq_b,
        wpv_t=wpv_t, wpv_b=wpv_b, ws_row=ws_row, ws_b=ws_b,
        wg_t=wg_t, wg_b=wg_b, w_gru=w_gru, b_rz=b_rz,
        bih_n=bih_n, bhh_n=bhh_n,
    )


def gated_recurrent_layer(P, Q, prm, *, time_chunk=8):
    B, Lp, H = P.shape
    _, Lq, _ = Q.shape
    packed = pack_params(prm)

    # Time-chunking: T recurrent steps per grid iteration; pad Lp if needed.
    T = min(time_chunk, Lp)
    Lp_pad = T * ((Lp + T - 1) // T)
    P_pad = P.astype(jnp.float32)
    if Lp_pad != Lp:
        P_pad = jnp.pad(P_pad, ((0, 0), (0, Lp_pad - Lp), (0, 0)))

    # Time-invariant wq(Q) projection at full MXU efficiency in XLA; pass bf16
    # to halve the resident VMEM footprint (matters on v7x's 64 MiB).
    wqQ = (Q.astype(jnp.float32) @ packed["wq_t"] + packed["wq_b"]).astype(jnp.bfloat16)
    Q_bf = Q.astype(jnp.bfloat16)

    weights = [packed[k] for k in (
        "wpv_t", "wpv_b", "ws_row", "ws_b",
        "wg_t", "wg_b", "w_gru", "b_rz", "bih_n", "bhh_n")]

    def w_spec(shape):
        return pl.BlockSpec(shape, lambda t: (0, 0))

    in_specs = [
        pl.BlockSpec((B, T, H), lambda t: (0, t, 0)),     # P time-chunk
        pl.BlockSpec((B, Lq, H), lambda t: (0, 0, 0)),    # Q (resident, bf16)
        pl.BlockSpec((B, Lq, H), lambda t: (0, 0, 0)),    # wq(Q) (resident, bf16)
    ] + [w_spec(w.shape) for w in weights]

    out = pl.pallas_call(
        gated_recurrent_kernel,
        out_shape=jax.ShapeDtypeStruct((B, Lp_pad, H), jnp.float32),
        grid_spec=pltpu.PrefetchScalarGridSpec(
            num_scalar_prefetch=0,
            grid=(Lp_pad // T,),
            in_specs=in_specs,
            out_specs=pl.BlockSpec((B, T, H), lambda t: (0, t, 0)),
            scratch_shapes=[
                pltpu.VMEM((B, H), jnp.float32),          # vp recurrent state
            ],
        ),
        compiler_params=pltpu.CompilerParams(
            dimension_semantics=("arbitrary",),           # sequential recurrence
            vmem_limit_bytes=32 * 1024 * 1024,            # explicit, safe on v5e/v6e/v7x
        ),
    )(P_pad, Q_bf, wqQ, *weights)

    return out[:, :Lp, :] if Lp_pad != Lp else out


def init_params(key, H):
    """Deterministic raw parameters (PyTorch-style uniform bounds)."""
    def u(k, fan_in, shape):
        bound = 1.0 / float(fan_in) ** 0.5
        return jax.random.uniform(k, shape, jnp.float32, -bound, bound)

    ks = jax.random.split(key, 14)
    return {
        "wq": u(ks[0], H, (H, H)), "wq_b": u(ks[1], H, (H,)),
        "wp": u(ks[2], H, (H, H)), "wp_b": u(ks[3], H, (H,)),
        "wv": u(ks[4], H, (H, H)), "wv_b": u(ks[5], H, (H,)),
        "ws": u(ks[6], H, (1, H)), "ws_b": u(ks[7], H, (1,)),
        "wg": u(ks[8], 2 * H, (H, 2 * H)), "wg_b": u(ks[9], 2 * H, (H,)),
        "w_ih": u(ks[10], H, (3 * H, H)), "b_ih": u(ks[11], H, (3 * H,)),
        "w_hh": u(ks[12], H, (3 * H, H)), "b_hh": u(ks[13], H, (3 * H,)),
    }


def reference(P, Q, prm):
    """Pure-JAX f32 reference mirroring the PyTorch forward pass."""
    B, Lp, H = P.shape
    vp = jnp.zeros((B, H), jnp.float32)
    wqQ = Q @ prm["wq"].T + prm["wq_b"]
    outs = []
    for i in range(Lp):
        p = P[:, i, :]
        attn = (wqQ
                + (p @ prm["wp"].T + prm["wp_b"])[:, None, :]
                + (vp @ prm["wv"].T + prm["wv_b"])[:, None, :])
        s = jnp.squeeze(jnp.tanh(attn) @ prm["ws"].T, -1) + prm["ws_b"]
        a = jax.nn.softmax(s, axis=1)
        c = jnp.einsum("bl,blh->bh", a, Q)
        g = jax.nn.sigmoid(
            jnp.concatenate([p, c], axis=1) @ prm["wg"].T + prm["wg_b"])
        c = g * c
        gi = c @ prm["w_ih"].T + prm["b_ih"]
        gh = vp @ prm["w_hh"].T + prm["b_hh"]
        r = jax.nn.sigmoid(gi[:, :H] + gh[:, :H])
        z = jax.nn.sigmoid(gi[:, H:2 * H] + gh[:, H:2 * H])
        n = jnp.tanh(gi[:, 2 * H:] + r * gh[:, 2 * H:])
        vp = (1.0 - z) * n + z * vp
        outs.append(vp)
    return jnp.stack(outs, axis=1)


if __name__ == "__main__":
    key = jax.random.PRNGKey(0)
    k_p, k_q, k_params = jax.random.split(key, 3)

    B, Lp, Lq, H = 2, 8, 8, 32
    P = jax.random.normal(k_p, (B, Lp, H), jnp.float32)
    Q = jax.random.normal(k_q, (B, Lq, H), jnp.float32)
    prm = init_params(k_params, H)

    out = gated_recurrent_layer(P, Q, prm)
    out = jax.block_until_ready(out)

    ref = reference(P, Q, prm)
    err = float(jnp.max(jnp.abs(out - ref)))
    assert out.shape == (B, Lp, H), out.shape
    # bf16 matmuls + approx reciprocal -> loosened tolerance vs f32 reference.
    assert jnp.allclose(out, ref, rtol=5e-2, atol=5e-2), f"max abs err {err}"

    print("KERNEL_OK")
</pallas_src>

<mosaic_0001>
module attributes {stable_mosaic.version = 11 : i64} {
  func.func @gated_recurrent_kernel(%arg0: i32, %arg1: memref<2x8x32xf32, #tpu.memory_space<vmem>>, %arg2: memref<2x8x32xbf16, #tpu.memory_space<vmem>>, %arg3: memref<2x8x32xbf16, #tpu.memory_space<vmem>>, %arg4: memref<64x32xbf16, #tpu.memory_space<vmem>>, %arg5: memref<1x32xf32, #tpu.memory_space<vmem>>, %arg6: memref<1x32xf32, #tpu.memory_space<vmem>>, %arg7: memref<1x1xf32, #tpu.memory_space<vmem>>, %arg8: memref<64x32xbf16, #tpu.memory_space<vmem>>, %arg9: memref<1x32xf32, #tpu.memory_space<vmem>>, %arg10: memref<64x128xbf16, #tpu.memory_space<vmem>>, %arg11: memref<1x64xf32, #tpu.memory_space<vmem>>, %arg12: memref<1x32xf32, #tpu.memory_space<vmem>>, %arg13: memref<1x32xf32, #tpu.memory_space<vmem>>, %arg14: memref<2x8x32xf32, #tpu.memory_space<vmem>>, %arg15: memref<2x32xf32, #tpu.memory_space<vmem>>) attributes {dimension_semantics = [#tpu.dimension_semantics<arbitrary>], iteration_bounds = array<i64: 1>, scalar_prefetch = 0 : i64, scratch_operands = 1 : i64, tpu.core_type = #tpu.core_type<tc>, window_params = [{transform_indices = @transform_0, window_bounds = array<i64: 2, 8, 32>}, {pipeline_mode = #tpu.pipeline_mode<synchronous>, transform_indices = @transform_1, window_bounds = array<i64: 2, 8, 32>}, {pipeline_mode = #tpu.pipeline_mode<synchronous>, transform_indices = @transform_2, window_bounds = array<i64: 2, 8, 32>}, {pipeline_mode = #tpu.pipeline_mode<synchronous>, transform_indices = @transform_3, window_bounds = array<i64: 64, 32>}, {pipeline_mode = #tpu.pipeline_mode<synchronous>, transform_indices = @transform_4, window_bounds = array<i64: 1, 32>}, {pipeline_mode = #tpu.pipeline_mode<synchronous>, transform_indices = @transform_5, window_bounds = array<i64: 1, 32>}, {pipeline_mode = #tpu.pipeline_mode<synchronous>, transform_indices = @transform_6, window_bounds = array<i64: 1, 1>}, {pipeline_mode = #tpu.pipeline_mode<synchronous>, transform_indices = @transform_7, window_bounds = array<i64: 64, 32>}, {pipeline_mode = #tpu.pipeline_mode<synchronous>, transform_indices = @transform_8, window_bounds = array<i64: 1, 32>}, {pipeline_mode = #tpu.pipeline_mode<synchronous>, transform_indices = @transform_9, window_bounds = array<i64: 64, 128>}, {pipeline_mode = #tpu.pipeline_mode<synchronous>, transform_indices = @transform_10, window_bounds = array<i64: 1, 64>}, {pipeline_mode = #tpu.pipeline_mode<synchronous>, transform_indices = @transform_11, window_bounds = array<i64: 1, 32>}, {pipeline_mode = #tpu.pipeline_mode<synchronous>, transform_indices = @transform_12, window_bounds = array<i64: 1, 32>}, {transform_indices = @transform_13, window_bounds = array<i64: 2, 8, 32>}]} {
    %c0_i32 = arith.constant 0 : i32
    %0 = arith.cmpi eq, %arg0, %c0_i32 : i32
    %1 = arith.extui %0 : i1 to i32
    %c0_i32_0 = arith.constant 0 : i32
    %2 = arith.cmpi ne, %1, %c0_i32_0 : i32
    scf.if %2 {
      %cst_142 = arith.constant 0.000000e+00 : f32
      %596 = vector.broadcast %cst_142 : f32 to vector<2x32xf32>
      %c0_143 = arith.constant 0 : index
      %c0_144 = arith.constant 0 : index
      %597 = vector.load %arg15[%c0_143, %c0_144] : memref<2x32xf32, #tpu.memory_space<vmem>>, vector<2x32xf32>
      tpu.vector_store %arg15[%c0_143, %c0_144], %596 {strides = array<i32>} : memref<2x32xf32, #tpu.memory_space<vmem>>, vector<2x32xf32>,
    } else {
    }
    %c0 = arith.constant 0 : index
    %c0_1 = arith.constant 0 : index
    %c0_2 = arith.constant 0 : index
    %3 = vector.load %arg2[%c0, %c0_1, %c0_2] : memref<2x8x32xbf16, #tpu.memory_space<vmem>>, vector<2x8x32xbf16>
    %4 = arith.extf %3 : vector<2x8x32xbf16> to vector<2x8x32xf32>
    %c0_3 = arith.constant 0 : index
    %c0_4 = arith.constant 0 : index
    %c0_5 = arith.constant 0 : index
    %5 = vector.load %arg3[%c0_3, %c0_4, %c0_5] : memref<2x8x32xbf16, #tpu.memory_space<vmem>>, vector<2x8x32xbf16>
    %6 = arith.extf %5 : vector<2x8x32xbf16> to vector<2x8x32xf32>
    %c0_6 = arith.constant 0 : index
    %c0_7 = arith.constant 0 : index
    %7 = vector.load %arg4[%c0_6, %c0_7] : memref<64x32xbf16, #tpu.memory_space<vmem>>, vector<64x32xbf16>
    %c0_8 = arith.constant 0 : index
    %c0_9 = arith.constant 0 : index
    %8 = vector.load %arg5[%c0_8, %c0_9] : memref<1x32xf32, #tpu.memory_space<vmem>>, vector<1x32xf32>
    %c0_10 = arith.constant 0 : index
    %c0_11 = arith.constant 0 : index
    %9 = vector.load %arg6[%c0_10, %c0_11] : memref<1x32xf32, #tpu.memory_space<vmem>>, vector<1x32xf32>
    %10 = vector.shape_cast %9 : vector<1x32xf32> to vector<1x1x32xf32>
    %c0_12 = arith.constant 0 : index
    %c0_13 = arith.constant 0 : index
    %11 = vector.load %arg7[%c0_12, %c0_13] : memref<1x1xf32, #tpu.memory_space<vmem>>, vector<1x1xf32>
    %c0_14 = arith.constant 0 : index
    %c0_15 = arith.constant 0 : index
    %12 = vector.load %arg8[%c0_14, %c0_15] : memref<64x32xbf16, #tpu.memory_space<vmem>>, vector<64x32xbf16>
    %c0_16 = arith.constant 0 : index
    %c0_17 = arith.constant 0 : index
    %13 = vector.load %arg9[%c0_16, %c0_17] : memref<1x32xf32, #tpu.memory_space<vmem>>, vector<1x32xf32>
    %c0_18 = arith.constant 0 : index
    %c0_19 = arith.constant 0 : index
    %14 = vector.load %arg10[%c0_18, %c0_19] : memref<64x128xbf16, #tpu.memory_space<vmem>>, vector<64x128xbf16>
    %c0_20 = arith.constant 0 : index
    %c0_21 = arith.constant 0 : index
    %15 = vector.load %arg11[%c0_20, %c0_21] : memref<1x64xf32, #tpu.memory_space<vmem>>, vector<1x64xf32>
    %c0_22 = arith.constant 0 : index
    %c0_23 = arith.constant 0 : index
    %16 = vector.load %arg12[%c0_22, %c0_23] : memref<1x32xf32, #tpu.memory_space<vmem>>, vector<1x32xf32>
    %c0_24 = arith.constant 0 : index
    %c0_25 = arith.constant 0 : index
    %17 = vector.load %arg13[%c0_24, %c0_25] : memref<1x32xf32, #tpu.memory_space<vmem>>, vector<1x32xf32>
    %c0_26 = arith.constant 0 : index
    %c0_27 = arith.constant 0 : index
    %18 = vector.load %arg15[%c0_26, %c0_27] : memref<2x32xf32, #tpu.memory_space<vmem>>, vector<2x32xf32>
    %c0_i32_28 = arith.constant 0 : i32
    %c0_29 = arith.constant 0 : index
    %19 = arith.index_cast %c0_i32_28 : i32 to index
    %c0_30 = arith.constant 0 : index
    %20 = vector.load %arg1[%c0_29, %19, %c0_30] : memref<2x8x32xf32, #tpu.memory_space<vmem>>, vector<2x1x32xf32>
    %21 = vector.shape_cast %20 : vector<2x1x32xf32> to vector<2x32xf32>
    %22 = tpu.concatenate %21, %18 in 1 : vector<2x32xf32>, vector<2x32xf32> -> vector<2x64xf32>
    %23 = arith.truncf %22 : vector<2x64xf32> to vector<2x64xbf16>
    %cst = arith.constant dense<0.000000e+00> : vector<2x32xf32>
    %24 = tpu.matmul %23, %7, %cst {dimension_numbers = #tpu.dot_dimension_numbers<[1], [0], [0], [1], [0, 0, 1, 1], [], []>} : vector<2x64xbf16>, vector<64x32xbf16>, vector<2x32xf32> -> vector<2x32xf32>
    %25 = vector.broadcast %8 : vector<1x32xf32> to vector<2x32xf32>
    %26 = arith.addf %24, %25 : vector<2x32xf32>
    %27 = vector.shape_cast %26 : vector<2x32xf32> to vector<2x1x32xf32>
    %28 = vector.broadcast %27 : vector<2x1x32xf32> to vector<2x8x32xf32>
    %29 = arith.addf %6, %28 : vector<2x8x32xf32>
    %30 = math.tanh %29 : vector<2x8x32xf32>
    %31 = vector.broadcast %10 : vector<1x1x32xf32> to vector<2x8x32xf32>
    %32 = arith.mulf %30, %31 : vector<2x8x32xf32>
    %cst_31 = arith.constant dense<0.000000e+00> : vector<2x8xf32>
    %33 = vector.multi_reduction <add>, %32, %cst_31 [2] : vector<2x8x32xf32> to vector<2x8xf32>
    %34 = vector.broadcast %11 : vector<1x1xf32> to vector<2x8xf32>
    %35 = arith.addf %33, %34 : vector<2x8xf32>
    %cst_32 = arith.constant dense<0xFF800000> : vector<2xf32>
    %36 = vector.multi_reduction <maximumf>, %35, %cst_32 [1] : vector<2x8xf32> to vector<2xf32>
    %37 = vector.shape_cast %36 : vector<2xf32> to vector<2x1xf32>
    %38 = vector.broadcast %37 : vector<2x1xf32> to vector<2x8xf32>
    %39 = arith.subf %35, %38 : vector<2x8xf32>
    %40 = math.exp %39 : vector<2x8xf32>
    %cst_33 = arith.constant dense<0.000000e+00> : vector<2xf32>
    %41 = vector.multi_reduction <add>, %40, %cst_33 [1] : vector<2x8xf32> to vector<2xf32>
    %42 = vector.shape_cast %41 : vector<2xf32> to vector<2x1xf32>
    %43 = tpu.reciprocal %42 {approx = true} : vector<2x1xf32> -> vector<2x1xf32>
    %44 = vector.broadcast %43 : vector<2x1xf32> to vector<2x8xf32>
    %45 = arith.mulf %40, %44 : vector<2x8xf32>
    %46 = vector.shape_cast %45 : vector<2x8xf32> to vector<2x8x1xf32>
    %47 = vector.broadcast %46 : vector<2x8x1xf32> to vector<2x8x32xf32>
    %48 = arith.mulf %47, %4 : vector<2x8x32xf32>
    %cst_34 = arith.constant dense<0.000000e+00> : vector<2x32xf32>
    %49 = vector.multi_reduction <add>, %48, %cst_34 [1] : vector<2x8x32xf32> to vector<2x32xf32>
    %50 = tpu.concatenate %21, %49 in 1 : vector<2x32xf32>, vector<2x32xf32> -> vector<2x64xf32>
    %51 = arith.truncf %50 : vector<2x64xf32> to vector<2x64xbf16>
    %cst_35 = arith.constant dense<0.000000e+00> : vector<2x32xf32>
    %52 = tpu.matmul %51, %12, %cst_35 {dimension_numbers = #tpu.dot_dimension_numbers<[1], [0], [0], [1], [0, 0, 1, 1], [], []>} : vector<2x64xbf16>, vector<64x32xbf16>, vector<2x32xf32> -> vector<2x32xf32>
    %53 = vector.broadcast %13 : vector<1x32xf32> to vector<2x32xf32>
    %54 = arith.addf %52, %53 : vector<2x32xf32>
    %55 = arith.negf %54 : vector<2x32xf32>
    %56 = math.exp %55 : vector<2x32xf32>
    %cst_36 = arith.constant 1.000000e+00 : f32
    %57 = vector.broadcast %cst_36 : f32 to vector<2x32xf32>
    %58 = arith.addf %57, %56 : vector<2x32xf32>
    %59 = arith.divf %57, %58 : vector<2x32xf32>
    %60 = arith.mulf %59, %49 : vector<2x32xf32>
    %61 = tpu.concatenate %60, %18 in 1 : vector<2x32xf32>, vector<2x32xf32> -> vector<2x64xf32>
    %62 = arith.truncf %61 : vector<2x64xf32> to vector<2x64xbf16>
    %cst_37 = arith.constant dense<0.000000e+00> : vector<2x128xf32>
    %63 = tpu.matmul %62, %14, %cst_37 {dimension_numbers = #tpu.dot_dimension_numbers<[1], [0], [0], [1], [0, 0, 1, 1], [], []>} : vector<2x64xbf16>, vector<64x128xbf16>, vector<2x128xf32> -> vector<2x128xf32>
    %64 = vector.extract_strided_slice %63 {offsets = [0, 0], sizes = [2, 64], strides = [1, 1]} : vector<2x128xf32> to vector<2x64xf32>
    %65 = vector.broadcast %15 : vector<1x64xf32> to vector<2x64xf32>
    %66 = arith.addf %64, %65 : vector<2x64xf32>
    %67 = arith.negf %66 : vector<2x64xf32>
    %68 = math.exp %67 : vector<2x64xf32>
    %cst_38 = arith.constant 1.000000e+00 : f32
    %69 = vector.broadcast %cst_38 : f32 to vector<2x64xf32>
    %70 = arith.addf %69, %68 : vector<2x64xf32>
    %71 = arith.divf %69, %70 : vector<2x64xf32>
    %72 = vector.extract_strided_slice %71 {offsets = [0, 0], sizes = [2, 32], strides = [1, 1]} : vector<2x64xf32> to vector<2x32xf32>
    %73 = vector.extract_strided_slice %71 {offsets = [0, 32], sizes = [2, 32], strides = [1, 1]} : vector<2x64xf32> to vector<2x32xf32>
    %74 = vector.extract_strided_slice %63 {offsets = [0, 64], sizes = [2, 32], strides = [1, 1]} : vector<2x128xf32> to vector<2x32xf32>
    %75 = vector.broadcast %16 : vector<1x32xf32> to vector<2x32xf32>
    %76 = arith.addf %74, %75 : vector<2x32xf32>
    %77 = vector.extract_strided_slice %63 {offsets = [0, 96], sizes = [2, 32], strides = [1, 1]} : vector<2x128xf32> to vector<2x32xf32>
    %78 = vector.broadcast %17 : vector<1x32xf32> to vector<2x32xf32>
    %79 = arith.addf %77, %78 : vector<2x32xf32>
    %80 = arith.mulf %72, %79 : vector<2x32xf32>
    %81 = arith.addf %76, %80 : vector<2x32xf32>
    %82 = math.tanh %81 : vector<2x32xf32>
    %cst_39 = arith.constant 1.000000e+00 : f32
    %83 = vector.broadcast %cst_39 : f32 to vector<2x32xf32>
    %84 = arith.subf %83, %73 : vector<2x32xf32>
    %85 = arith.mulf %84, %82 : vector<2x32xf32>
    %86 = arith.mulf %73, %18 : vector<2x32xf32>
    %87 = arith.addf %85, %86 : vector<2x32xf32>
    %88 = vector.shape_cast %87 : vector<2x32xf32> to vector<2x1x32xf32>
    %c0_40 = arith.constant 0 : index
    %89 = arith.index_cast %c0_i32_28 : i32 to index
    %c0_41 = arith.constant 0 : index
    %90 = vector.load %arg14[%c0_40, %89, %c0_41] : memref<2x8x32xf32, #tpu.memory_space<vmem>>, vector<2x1x32xf32>
    tpu.vector_store %arg14[%c0_40, %89, %c0_41], %88 {strides = array<i32>} : memref<2x8x32xf32, #tpu.memory_space<vmem>>, vector<2x1x32xf32>,
    %c1_i32 = arith.constant 1 : i32
    %c0_42 = arith.constant 0 : index
    %91 = arith.index_cast %c1_i32 : i32 to index
    %c0_43 = arith.constant 0 : index
    %92 = vector.load %arg1[%c0_42, %91, %c0_43] : memref<2x8x32xf32, #tpu.memory_space<vmem>>, vector<2x1x32xf32>
    %93 = vector.shape_cast %92 : vector<2x1x32xf32> to vector<2x32xf32>
    %94 = tpu.concatenate %93, %87 in 1 : vector<2x32xf32>, vector<2x32xf32> -> vector<2x64xf32>
    %95 = arith.truncf %94 : vector<2x64xf32> to vector<2x64xbf16>
    %cst_44 = arith.constant dense<0.000000e+00> : vector<2x32xf32>
    %96 = tpu.matmul %95, %7, %cst_44 {dimension_numbers = #tpu.dot_dimension_numbers<[1], [0], [0], [1], [0, 0, 1, 1], [], []>} : vector<2x64xbf16>, vector<64x32xbf16>, vector<2x32xf32> -> vector<2x32xf32>
    %97 = vector.broadcast %8 : vector<1x32xf32> to vector<2x32xf32>
    %98 = arith.addf %96, %97 : vector<2x32xf32>
    %99 = vector.shape_cast %98 : vector<2x32xf32> to vector<2x1x32xf32>
    %100 = vector.broadcast %99 : vector<2x1x32xf32> to vector<2x8x32xf32>
    %101 = arith.addf %6, %100 : vector<2x8x32xf32>
    %102 = math.tanh %101 : vector<2x8x32xf32>
    %103 = vector.broadcast %10 : vector<1x1x32xf32> to vector<2x8x32xf32>
    %104 = arith.mulf %102, %103 : vector<2x8x32xf32>
    %cst_45 = arith.constant dense<0.000000e+00> : vector<2x8xf32>
    %105 = vector.multi_reduction <add>, %104, %cst_45 [2] : vector<2x8x32xf32> to vector<2x8xf32>
    %106 = vector.broadcast %11 : vector<1x1xf32> to vector<2x8xf32>
    %107 = arith.addf %105, %106 : vector<2x8xf32>
    %cst_46 = arith.constant dense<0xFF800000> : vector<2xf32>
    %108 = vector.multi_reduction <maximumf>, %107, %cst_46 [1] : vector<2x8xf32> to vector<2xf32>
    %109 = vector.shape_cast %108 : vector<2xf32> to vector<2x1xf32>
    %110 = vector.broadcast %109 : vector<2x1xf32> to vector<2x8xf32>
    %111 = arith.subf %107, %110 : vector<2x8xf32>
    %112 = math.exp %111 : vector<2x8xf32>
    %cst_47 = arith.constant dense<0.000000e+00> : vector<2xf32>
    %113 = vector.multi_reduction <add>, %112, %cst_47 [1] : vector<2x8xf32> to vector<2xf32>
    %114 = vector.shape_cast %113 : vector<2xf32> to vector<2x1xf32>
    %115 = tpu.reciprocal %114 {approx = true} : vector<2x1xf32> -> vector<2x1xf32>
    %116 = vector.broadcast %115 : vector<2x1xf32> to vector<2x8xf32>
    %117 = arith.mulf %112, %116 : vector<2x8xf32>
    %118 = vector.shape_cast %117 : vector<2x8xf32> to vector<2x8x1xf32>
    %119 = vector.broadcast %118 : vector<2x8x1xf32> to vector<2x8x32xf32>
    %120 = arith.mulf %119, %4 : vector<2x8x32xf32>
    %cst_48 = arith.constant dense<0.000000e+00> : vector<2x32xf32>
    %121 = vector.multi_reduction <add>, %120, %cst_48 [1] : vector<2x8x32xf32> to vector<2x32xf32>
    %122 = tpu.concatenate %93, %121 in 1 : vector<2x32xf32>, vector<2x32xf32> -> vector<2x64xf32>
    %123 = arith.truncf %122 : vector<2x64xf32> to vector<2x64xbf16>
    %cst_49 = arith.constant dense<0.000000e+00> : vector<2x32xf32>
    %124 = tpu.matmul %123, %12, %cst_49 {dimension_numbers = #tpu.dot_dimension_numbers<[1], [0], [0], [1], [0, 0, 1, 1], [], []>} : vector<2x64xbf16>, vector<64x32xbf16>, vector<2x32xf32> -> vector<2x32xf32>
    %125 = vector.broadcast %13 : vector<1x32xf32> to vector<2x32xf32>
    %126 = arith.addf %124, %125 : vector<2x32xf32>
    %127 = arith.negf %126 : vector<2x32xf32>
    %128 = math.exp %127 : vector<2x32xf32>
    %cst_50 = arith.constant 1.000000e+00 : f32
    %129 = vector.broadcast %cst_50 : f32 to vector<2x32xf32>
    %130 = arith.addf %129, %128 : vector<2x32xf32>
    %131 = arith.divf %129, %130 : vector<2x32xf32>
    %132 = arith.mulf %131, %121 : vector<2x32xf32>
    %133 = tpu.concatenate %132, %87 in 1 : vector<2x32xf32>, vector<2x32xf32> -> vector<2x64xf32>
    %134 = arith.truncf %133 : vector<2x64xf32> to vector<2x64xbf16>
    %cst_51 = arith.constant dense<0.000000e+00> : vector<2x128xf32>
    %135 = tpu.matmul %134, %14, %cst_51 {dimension_numbers = #tpu.dot_dimension_numbers<[1], [0], [0], [1], [0, 0, 1, 1], [], []>} : vector<2x64xbf16>, vector<64x128xbf16>, vector<2x128xf32> -> vector<2x128xf32>
    %136 = vector.extract_strided_slice %135 {offsets = [0, 0], sizes = [2, 64], strides = [1, 1]} : vector<2x128xf32> to vector<2x64xf32>
    %137 = vector.broadcast %15 : vector<1x64xf32> to vector<2x64xf32>
    %138 = arith.addf %136, %137 : vector<2x64xf32>
    %139 = arith.negf %138 : vector<2x64xf32>
    %140 = math.exp %139 : vector<2x64xf32>
    %cst_52 = arith.constant 1.000000e+00 : f32
    %141 = vector.broadcast %cst_52 : f32 to vector<2x64xf32>
    %142 = arith.addf %141, %140 : vector<2x64xf32>
    %143 = arith.divf %141, %142 : vector<2x64xf32>
    %144 = vector.extract_strided_slice %143 {offsets = [0, 0], sizes = [2, 32], strides = [1, 1]} : vector<2x64xf32> to vector<2x32xf32>
    %145 = vector.extract_strided_slice %143 {offsets = [0, 32], sizes = [2, 32], strides = [1, 1]} : vector<2x64xf32> to vector<2x32xf32>
    %146 = vector.extract_strided_slice %135 {offsets = [0, 64], sizes = [2, 32], strides = [1, 1]} : vector<2x128xf32> to vector<2x32xf32>
    %147 = vector.broadcast %16 : vector<1x32xf32> to vector<2x32xf32>
    %148 = arith.addf %146, %147 : vector<2x32xf32>
    %149 = vector.extract_strided_slice %135 {offsets = [0, 96], sizes = [2, 32], strides = [1, 1]} : vector<2x128xf32> to vector<2x32xf32>
    %150 = vector.broadcast %17 : vector<1x32xf32> to vector<2x32xf32>
    %151 = arith.addf %149, %150 : vector<2x32xf32>
    %152 = arith.mulf %144, %151 : vector<2x32xf32>
    %153 = arith.addf %148, %152 : vector<2x32xf32>
    %154 = math.tanh %153 : vector<2x32xf32>
    %cst_53 = arith.constant 1.000000e+00 : f32
    %155 = vector.broadcast %cst_53 : f32 to vector<2x32xf32>
    %156 = arith.subf %155, %145 : vector<2x32xf32>
    %157 = arith.mulf %156, %154 : vector<2x32xf32>
    %158 = arith.mulf %145, %87 : vector<2x32xf32>
    %159 = arith.addf %157, %158 : vector<2x32xf32>
    %160 = vector.shape_cast %159 : vector<2x32xf32> to vector<2x1x32xf32>
    %c0_54 = arith.constant 0 : index
    %161 = arith.index_cast %c1_i32 : i32 to index
    %c0_55 = arith.constant 0 : index
    %162 = vector.load %arg14[%c0_54, %161, %c0_55] : memref<2x8x32xf32, #tpu.memory_space<vmem>>, vector<2x1x32xf32>
    tpu.vector_store %arg14[%c0_54, %161, %c0_55], %160 {strides = array<i32>} : memref<2x8x32xf32, #tpu.memory_space<vmem>>, vector<2x1x32xf32>,
    %c2_i32 = arith.constant 2 : i32
    %c0_56 = arith.constant 0 : index
    %163 = arith.index_cast %c2_i32 : i32 to index
    %c0_57 = arith.constant 0 : index
    %164 = vector.load %arg1[%c0_56, %163, %c0_57] : memref<2x8x32xf32, #tpu.memory_space<vmem>>, vector<2x1x32xf32>
    %165 = vector.shape_cast %164 : vector<2x1x32xf32> to vector<2x32xf32>
    %166 = tpu.concatenate %165, %159 in 1 : vector<2x32xf32>, vector<2x32xf32> -> vector<2x64xf32>
    %167 = arith.truncf %166 : vector<2x64xf32> to vector<2x64xbf16>
    %cst_58 = arith.constant dense<0.000000e+00> : vector<2x32xf32>
    %168 = tpu.matmul %167, %7, %cst_58 {dimension_numbers = #tpu.dot_dimension_numbers<[1], [0], [0], [1], [0, 0, 1, 1], [], []>} : vector<2x64xbf16>, vector<64x32xbf16>, vector<2x32xf32> -> vector<2x32xf32>
    %169 = vector.broadcast %8 : vector<1x32xf32> to vector<2x32xf32>
    %170 = arith.addf %168, %169 : vector<2x32xf32>
    %171 = vector.shape_cast %170 : vector<2x32xf32> to vector<2x1x32xf32>
    %172 = vector.broadcast %171 : vector<2x1x32xf32> to vector<2x8x32xf32>
    %173 = arith.addf %6, %172 : vector<2x8x32xf32>
    %174 = math.tanh %173 : vector<2x8x32xf32>
    %175 = vector.broadcast %10 : vector<1x1x32xf32> to vector<2x8x32xf32>
    %176 = arith.mulf %174, %175 : vector<2x8x32xf32>
    %cst_59 = arith.constant dense<0.000000e+00> : vector<2x8xf32>
    %177 = vector.multi_reduction <add>, %176, %cst_59 [2] : vector<2x8x32xf32> to vector<2x8xf32>
    %178 = vector.broadcast %11 : vector<1x1xf32> to vector<2x8xf32>
    %179 = arith.addf %177, %178 : vector<2x8xf32>
    %cst_60 = arith.constant dense<0xFF800000> : vector<2xf32>
    %180 = vector.multi_reduction <maximumf>, %179, %cst_60 [1] : vector<2x8xf32> to vector<2xf32>
    %181 = vector.shape_cast %180 : vector<2xf32> to vector<2x1xf32>
    %182 = vector.broadcast %181 : vector<2x1xf32> to vector<2x8xf32>
    %183 = arith.subf %179, %182 : vector<2x8xf32>
    %184 = math.exp %183 : vector<2x8xf32>
    %cst_61 = arith.constant dense<0.000000e+00> : vector<2xf32>
    %185 = vector.multi_reduction <add>, %184, %cst_61 [1] : vector<2x8xf32> to vector<2xf32>
    %186 = vector.shape_cast %185 : vector<2xf32> to vector<2x1xf32>
    %187 = tpu.reciprocal %186 {approx = true} : vector<2x1xf32> -> vector<2x1xf32>
    %188 = vector.broadcast %187 : vector<2x1xf32> to vector<2x8xf32>
    %189 = arith.mulf %184, %188 : vector<2x8xf32>
    %190 = vector.shape_cast %189 : vector<2x8xf32> to vector<2x8x1xf32>
    %191 = vector.broadcast %190 : vector<2x8x1xf32> to vector<2x8x32xf32>
    %192 = arith.mulf %191, %4 : vector<2x8x32xf32>
    %cst_62 = arith.constant dense<0.000000e+00> : vector<2x32xf32>
    %193 = vector.multi_reduction <add>, %192, %cst_62 [1] : vector<2x8x32xf32> to vector<2x32xf32>
    %194 = tpu.concatenate %165, %193 in 1 : vector<2x32xf32>, vector<2x32xf32> -> vector<2x64xf32>
    %195 = arith.truncf %194 : vector<2x64xf32> to vector<2x64xbf16>
    %cst_63 = arith.constant dense<0.000000e+00> : vector<2x32xf32>
    %196 = tpu.matmul %195, %12, %cst_63 {dimension_numbers = #tpu.dot_dimension_numbers<[1], [0], [0], [1], [0, 0, 1, 1], [], []>} : vector<2x64xbf16>, vector<64x32xbf16>, vector<2x32xf32> -> vector<2x32xf32>
    %197 = vector.broadcast %13 : vector<1x32xf32> to vector<2x32xf32>
    %198 = arith.addf %196, %197 : vector<2x32xf32>
    %199 = arith.negf %198 : vector<2x32xf32>
    %200 = math.exp %199 : vector<2x32xf32>
    %cst_64 = arith.constant 1.000000e+00 : f32
    %201 = vector.broadcast %cst_64 : f32 to vector<2x32xf32>
    %202 = arith.addf %201, %200 : vector<2x32xf32>
    %203 = arith.divf %201, %202 : vector<2x32xf32>
    %204 = arith.mulf %203, %193 : vector<2x32xf32>
    %205 = tpu.concatenate %204, %159 in 1 : vector<2x32xf32>, vector<2x32xf32> -> vector<2x64xf32>
    %206 = arith.truncf %205 : vector<2x64xf32> to vector<2x64xbf16>
    %cst_65 = arith.constant dense<0.000000e+00> : vector<2x128xf32>
    %207 = tpu.matmul %206, %14, %cst_65 {dimension_numbers = #tpu.dot_dimension_numbers<[1], [0], [0], [1], [0, 0, 1, 1], [], []>} : vector<2x64xbf16>, vector<64x128xbf16>, vector<2x128xf32> -> vector<2x128xf32>
    %208 = vector.extract_strided_slice %207 {offsets = [0, 0], sizes = [2, 64], strides = [1, 1]} : vector<2x128xf32> to vector<2x64xf32>
    %209 = vector.broadcast %15 : vector<1x64xf32> to vector<2x64xf32>
    %210 = arith.addf %208, %209 : vector<2x64xf32>
    %211 = arith.negf %210 : vector<2x64xf32>
    %212 = math.exp %211 : vector<2x64xf32>
    %cst_66 = arith.constant 1.000000e+00 : f32
    %213 = vector.broadcast %cst_66 : f32 to vector<2x64xf32>
    %214 = arith.addf %213, %212 : vector<2x64xf32>
    %215 = arith.divf %213, %214 : vector<2x64xf32>
    %216 = vector.extract_strided_slice %215 {offsets = [0, 0], sizes = [2, 32], strides = [1, 1]} : vector<2x64xf32> to vector<2x32xf32>
    %217 = vector.extract_strided_slice %215 {offsets = [0, 32], sizes = [2, 32], strides = [1, 1]} : vector<2x64xf32> to vector<2x32xf32>
    %218 = vector.extract_strided_slice %207 {offsets = [0, 64], sizes = [2, 32], strides = [1, 1]} : vector<2x128xf32> to vector<2x32xf32>
    %219 = vector.broadcast %16 : vector<1x32xf32> to vector<2x32xf32>
    %220 = arith.addf %218, %219 : vector<2x32xf32>
    %221 = vector.extract_strided_slice %207 {offsets = [0, 96], sizes = [2, 32], strides = [1, 1]} : vector<2x128xf32> to vector<2x32xf32>
    %222 = vector.broadcast %17 : vector<1x32xf32> to vector<2x32xf32>
    %223 = arith.addf %221, %222 : vector<2x32xf32>
    %224 = arith.mulf %216, %223 : vector<2x32xf32>
    %225 = arith.addf %220, %224 : vector<2x32xf32>
    %226 = math.tanh %225 : vector<2x32xf32>
    %cst_67 = arith.constant 1.000000e+00 : f32
    %227 = vector.broadcast %cst_67 : f32 to vector<2x32xf32>
    %228 = arith.subf %227, %217 : vector<2x32xf32>
    %229 = arith.mulf %228, %226 : vector<2x32xf32>
    %230 = arith.mulf %217, %159 : vector<2x32xf32>
    %231 = arith.addf %229, %230 : vector<2x32xf32>
    %232 = vector.shape_cast %231 : vector<2x32xf32> to vector<2x1x32xf32>
    %c0_68 = arith.constant 0 : index
    %233 = arith.index_cast %c2_i32 : i32 to index
    %c0_69 = arith.constant 0 : index
    %234 = vector.load %arg14[%c0_68, %233, %c0_69] : memref<2x8x32xf32, #tpu.memory_space<vmem>>, vector<2x1x32xf32>
    tpu.vector_store %arg14[%c0_68, %233, %c0_69], %232 {strides = array<i32>} : memref<2x8x32xf32, #tpu.memory_space<vmem>>, vector<2x1x32xf32>,
    %c3_i32 = arith.constant 3 : i32
    %c0_70 = arith.constant 0 : index
    %235 = arith.index_cast %c3_i32 : i32 to index
    %c0_71 = arith.constant 0 : index
    %236 = vector.load %arg1[%c0_70, %235, %c0_71] : memref<2x8x32xf32, #tpu.memory_space<vmem>>, vector<2x1x32xf32>
    %237 = vector.shape_cast %236 : vector<2x1x32xf32> to vector<2x32xf32>
    %238 = tpu.concatenate %237, %231 in 1 : vector<2x32xf32>, vector<2x32xf32> -> vector<2x64xf32>
    %239 = arith.truncf %238 : vector<2x64xf32> to vector<2x64xbf16>
    %cst_72 = arith.constant dense<0.000000e+00> : vector<2x32xf32>
    %240 = tpu.matmul %239, %7, %cst_72 {dimension_numbers = #tpu.dot_dimension_numbers<[1], [0], [0], [1], [0, 0, 1, 1], [], []>} : vector<2x64xbf16>, vector<64x32xbf16>, vector<2x32xf32> -> vector<2x32xf32>
    %241 = vector.broadcast %8 : vector<1x32xf32> to vector<2x32xf32>
    %242 = arith.addf %240, %241 : vector<2x32xf32>
    %243 = vector.shape_cast %242 : vector<2x32xf32> to vector<2x1x32xf32>
    %244 = vector.broadcast %243 : vector<2x1x32xf32> to vector<2x8x32xf32>
    %245 = arith.addf %6, %244 : vector<2x8x32xf32>
    %246 = math.tanh %245 : vector<2x8x32xf32>
    %247 = vector.broadcast %10 : vector<1x1x32xf32> to vector<2x8x32xf32>
    %248 = arith.mulf %246, %247 : vector<2x8x32xf32>
    %cst_73 = arith.constant dense<0.000000e+00> : vector<2x8xf32>
    %249 = vector.multi_reduction <add>, %248, %cst_73 [2] : vector<2x8x32xf32> to vector<2x8xf32>
    %250 = vector.broadcast %11 : vector<1x1xf32> to vector<2x8xf32>
    %251 = arith.addf %249, %250 : vector<2x8xf32>
    %cst_74 = arith.constant dense<0xFF800000> : vector<2xf32>
    %252 = vector.multi_reduction <maximumf>, %251, %cst_74 [1] : vector<2x8xf32> to vector<2xf32>
    %253 = vector.shape_cast %252 : vector<2xf32> to vector<2x1xf32>
    %254 = vector.broadcast %253 : vector<2x1xf32> to vector<2x8xf32>
    %255 = arith.subf %251, %254 : vector<2x8xf32>
    %256 = math.exp %255 : vector<2x8xf32>
    %cst_75 = arith.constant dense<0.000000e+00> : vector<2xf32>
    %257 = vector.multi_reduction <add>, %256, %cst_75 [1] : vector<2x8xf32> to vector<2xf32>
    %258 = vector.shape_cast %257 : vector<2xf32> to vector<2x1xf32>
    %259 = tpu.reciprocal %258 {approx = true} : vector<2x1xf32> -> vector<2x1xf32>
    %260 = vector.broadcast %259 : vector<2x1xf32> to vector<2x8xf32>
    %261 = arith.mulf %256, %260 : vector<2x8xf32>
    %262 = vector.shape_cast %261 : vector<2x8xf32> to vector<2x8x1xf32>
    %263 = vector.broadcast %262 : vector<2x8x1xf32> to vector<2x8x32xf32>
    %264 = arith.mulf %263, %4 : vector<2x8x32xf32>
    %cst_76 = arith.constant dense<0.000000e+00> : vector<2x32xf32>
    %265 = vector.multi_reduction <add>, %264, %cst_76 [1] : vector<2x8x32xf32> to vector<2x32xf32>
    %266 = tpu.concatenate %237, %265 in 1 : vector<2x32xf32>, vector<2x32xf32> -> vector<2x64xf32>
    %267 = arith.truncf %266 : vector<2x64xf32> to vector<2x64xbf16>
    %cst_77 = arith.constant dense<0.000000e+00> : vector<2x32xf32>
    %268 = tpu.matmul %267, %12, %cst_77 {dimension_numbers = #tpu.dot_dimension_numbers<[1], [0], [0], [1], [0, 0, 1, 1], [], []>} : vector<2x64xbf16>, vector<64x32xbf16>, vector<2x32xf32> -> vector<2x32xf32>
    %269 = vector.broadcast %13 : vector<1x32xf32> to vector<2x32xf32>
    %270 = arith.addf %268, %269 : vector<2x32xf32>
    %271 = arith.negf %270 : vector<2x32xf32>
    %272 = math.exp %271 : vector<2x32xf32>
    %cst_78 = arith.constant 1.000000e+00 : f32
    %273 = vector.broadcast %cst_78 : f32 to vector<2x32xf32>
    %274 = arith.addf %273, %272 : vector<2x32xf32>
    %275 = arith.divf %273, %274 : vector<2x32xf32>
    %276 = arith.mulf %275, %265 : vector<2x32xf32>
    %277 = tpu.concatenate %276, %231 in 1 : vector<2x32xf32>, vector<2x32xf32> -> vector<2x64xf32>
    %278 = arith.truncf %277 : vector<2x64xf32> to vector<2x64xbf16>
    %cst_79 = arith.constant dense<0.000000e+00> : vector<2x128xf32>
    %279 = tpu.matmul %278, %14, %cst_79 {dimension_numbers = #tpu.dot_dimension_numbers<[1], [0], [0], [1], [0, 0, 1, 1], [], []>} : vector<2x64xbf16>, vector<64x128xbf16>, vector<2x128xf32> -> vector<2x128xf32>
    %280 = vector.extract_strided_slice %279 {offsets = [0, 0], sizes = [2, 64], strides = [1, 1]} : vector<2x128xf32> to vector<2x64xf32>
    %281 = vector.broadcast %15 : vector<1x64xf32> to vector<2x64xf32>
    %282 = arith.addf %280, %281 : vector<2x64xf32>
    %283 = arith.negf %282 : vector<2x64xf32>
    %284 = math.exp %283 : vector<2x64xf32>
    %cst_80 = arith.constant 1.000000e+00 : f32
    %285 = vector.broadcast %cst_80 : f32 to vector<2x64xf32>
    %286 = arith.addf %285, %284 : vector<2x64xf32>
    %287 = arith.divf %285, %286 : vector<2x64xf32>
    %288 = vector.extract_strided_slice %287 {offsets = [0, 0], sizes = [2, 32], strides = [1, 1]} : vector<2x64xf32> to vector<2x32xf32>
    %289 = vector.extract_strided_slice %287 {offsets = [0, 32], sizes = [2, 32], strides = [1, 1]} : vector<2x64xf32> to vector<2x32xf32>
    %290 = vector.extract_strided_slice %279 {offsets = [0, 64], sizes = [2, 32], strides = [1, 1]} : vector<2x128xf32> to vector<2x32xf32>
    %291 = vector.broadcast %16 : vector<1x32xf32> to vector<2x32xf32>
    %292 = arith.addf %290, %291 : vector<2x32xf32>
    %293 = vector.extract_strided_slice %279 {offsets = [0, 96], sizes = [2, 32], strides = [1, 1]} : vector<2x128xf32> to vector<2x32xf32>
    %294 = vector.broadcast %17 : vector<1x32xf32> to vector<2x32xf32>
    %295 = arith.addf %293, %294 : vector<2x32xf32>
    %296 = arith.mulf %288, %295 : vector<2x32xf32>
    %297 = arith.addf %292, %296 : vector<2x32xf32>
    %298 = math.tanh %297 : vector<2x32xf32>
    %cst_81 = arith.constant 1.000000e+00 : f32
    %299 = vector.broadcast %cst_81 : f32 to vector<2x32xf32>
    %300 = arith.subf %299, %289 : vector<2x32xf32>
    %301 = arith.mulf %300, %298 : vector<2x32xf32>
    %302 = arith.mulf %289, %231 : vector<2x32xf32>
    %303 = arith.addf %301, %302 : vector<2x32xf32>
    %304 = vector.shape_cast %303 : vector<2x32xf32> to vector<2x1x32xf32>
    %c0_82 = arith.constant 0 : index
    %305 = arith.index_cast %c3_i32 : i32 to index
    %c0_83 = arith.constant 0 : index
    %306 = vector.load %arg14[%c0_82, %305, %c0_83] : memref<2x8x32xf32, #tpu.memory_space<vmem>>, vector<2x1x32xf32>
    tpu.vector_store %arg14[%c0_82, %305, %c0_83], %304 {strides = array<i32>} : memref<2x8x32xf32, #tpu.memory_space<vmem>>, vector<2x1x32xf32>,
    %c4_i32 = arith.constant 4 : i32
    %c0_84 = arith.constant 0 : index
    %307 = arith.index_cast %c4_i32 : i32 to index
    %c0_85 = arith.constant 0 : index
    %308 = vector.load %arg1[%c0_84, %307, %c0_85] : memref<2x8x32xf32, #tpu.memory_space<vmem>>, vector<2x1x32xf32>
    %309 = vector.shape_cast %308 : vector<2x1x32xf32> to vector<2x32xf32>
    %310 = tpu.concatenate %309, %303 in 1 : vector<2x32xf32>, vector<2x32xf32> -> vector<2x64xf32>
    %311 = arith.truncf %310 : vector<2x64xf32> to vector<2x64xbf16>
    %cst_86 = arith.constant dense<0.000000e+00> : vector<2x32xf32>
    %312 = tpu.matmul %311, %7, %cst_86 {dimension_numbers = #tpu.dot_dimension_numbers<[1], [0], [0], [1], [0, 0, 1, 1], [], []>} : vector<2x64xbf16>, vector<64x32xbf16>, vector<2x32xf32> -> vector<2x32xf32>
    %313 = vector.broadcast %8 : vector<1x32xf32> to vector<2x32xf32>
    %314 = arith.addf %312, %313 : vector<2x32xf32>
    %315 = vector.shape_cast %314 : vector<2x32xf32> to vector<2x1x32xf32>
    %316 = vector.broadcast %315 : vector<2x1x32xf32> to vector<2x8x32xf32>
    %317 = arith.addf %6, %316 : vector<2x8x32xf32>
    %318 = math.tanh %317 : vector<2x8x32xf32>
    %319 = vector.broadcast %10 : vector<1x1x32xf32> to vector<2x8x32xf32>
    %320 = arith.mulf %318, %319 : vector<2x8x32xf32>
    %cst_87 = arith.constant dense<0.000000e+00> : vector<2x8xf32>
    %321 = vector.multi_reduction <add>, %320, %cst_87 [2] : vector<2x8x32xf32> to vector<2x8xf32>
    %322 = vector.broadcast %11 : vector<1x1xf32> to vector<2x8xf32>
    %323 = arith.addf %321, %322 : vector<2x8xf32>
    %cst_88 = arith.constant dense<0xFF800000> : vector<2xf32>
    %324 = vector.multi_reduction <maximumf>, %323, %cst_88 [1] : vector<2x8xf32> to vector<2xf32>
    %325 = vector.shape_cast %324 : vector<2xf32> to vector<2x1xf32>
    %326 = vector.broadcast %325 : vector<2x1xf32> to vector<2x8xf32>
    %327 = arith.subf %323, %326 : vector<2x8xf32>
    %328 = math.exp %327 : vector<2x8xf32>
    %cst_89 = arith.constant dense<0.000000e+00> : vector<2xf32>
    %329 = vector.multi_reduction <add>, %328, %cst_89 [1] : vector<2x8xf32> to vector<2xf32>
    %330 = vector.shape_cast %329 : vector<2xf32> to vector<2x1xf32>
    %331 = tpu.reciprocal %330 {approx = true} : vector<2x1xf32> -> vector<2x1xf32>
    %332 = vector.broadcast %331 : vector<2x1xf32> to vector<2x8xf32>
    %333 = arith.mulf %328, %332 : vector<2x8xf32>
    %334 = vector.shape_cast %333 : vector<2x8xf32> to vector<2x8x1xf32>
    %335 = vector.broadcast %334 : vector<2x8x1xf32> to vector<2x8x32xf32>
    %336 = arith.mulf %335, %4 : vector<2x8x32xf32>
    %cst_90 = arith.constant dense<0.000000e+00> : vector<2x32xf32>
    %337 = vector.multi_reduction <add>, %336, %cst_90 [1] : vector<2x8x32xf32> to vector<2x32xf32>
    %338 = tpu.concatenate %309, %337 in 1 : vector<2x32xf32>, vector<2x32xf32> -> vector<2x64xf32>
    %339 = arith.truncf %338 : vector<2x64xf32> to vector<2x64xbf16>
    %cst_91 = arith.constant dense<0.000000e+00> : vector<2x32xf32>
    %340 = tpu.matmul %339, %12, %cst_91 {dimension_numbers = #tpu.dot_dimension_numbers<[1], [0], [0], [1], [0, 0, 1, 1], [], []>} : vector<2x64xbf16>, vector<64x32xbf16>, vector<2x32xf32> -> vector<2x32xf32>
    %341 = vector.broadcast %13 : vector<1x32xf32> to vector<2x32xf32>
    %342 = arith.addf %340, %341 : vector<2x32xf32>
    %343 = arith.negf %342 : vector<2x32xf32>
    %344 = math.exp %343 : vector<2x32xf32>
    %cst_92 = arith.constant 1.000000e+00 : f32
    %345 = vector.broadcast %cst_92 : f32 to vector<2x32xf32>
    %346 = arith.addf %345, %344 : vector<2x32xf32>
    %347 = arith.divf %345, %346 : vector<2x32xf32>
    %348 = arith.mulf %347, %337 : vector<2x32xf32>
    %349 = tpu.concatenate %348, %303 in 1 : vector<2x32xf32>, vector<2x32xf32> -> vector<2x64xf32>
    %350 = arith.truncf %349 : vector<2x64xf32> to vector<2x64xbf16>
    %cst_93 = arith.constant dense<0.000000e+00> : vector<2x128xf32>
    %351 = tpu.matmul %350, %14, %cst_93 {dimension_numbers = #tpu.dot_dimension_numbers<[1], [0], [0], [1], [0, 0, 1, 1], [], []>} : vector<2x64xbf16>, vector<64x128xbf16>, vector<2x128xf32> -> vector<2x128xf32>
    %352 = vector.extract_strided_slice %351 {offsets = [0, 0], sizes = [2, 64], strides = [1, 1]} : vector<2x128xf32> to vector<2x64xf32>
    %353 = vector.broadcast %15 : vector<1x64xf32> to vector<2x64xf32>
    %354 = arith.addf %352, %353 : vector<2x64xf32>
    %355 = arith.negf %354 : vector<2x64xf32>
    %356 = math.exp %355 : vector<2x64xf32>
    %cst_94 = arith.constant 1.000000e+00 : f32
    %357 = vector.broadcast %cst_94 : f32 to vector<2x64xf32>
    %358 = arith.addf %357, %356 : vector<2x64xf32>
    %359 = arith.divf %357, %358 : vector<2x64xf32>
    %360 = vector.extract_strided_slice %359 {offsets = [0, 0], sizes = [2, 32], strides = [1, 1]} : vector<2x64xf32> to vector<2x32xf32>
    %361 = vector.extract_strided_slice %359 {offsets = [0, 32], sizes = [2, 32], strides = [1, 1]} : vector<2x64xf32> to vector<2x32xf32>
    %362 = vector.extract_strided_slice %351 {offsets = [0, 64], sizes = [2, 32], strides = [1, 1]} : vector<2x128xf32> to vector<2x32xf32>
    %363 = vector.broadcast %16 : vector<1x32xf32> to vector<2x32xf32>
    %364 = arith.addf %362, %363 : vector<2x32xf32>
    %365 = vector.extract_strided_slice %351 {offsets = [0, 96], sizes = [2, 32], strides = [1, 1]} : vector<2x128xf32> to vector<2x32xf32>
    %366 = vector.broadcast %17 : vector<1x32xf32> to vector<2x32xf32>
    %367 = arith.addf %365, %366 : vector<2x32xf32>
    %368 = arith.mulf %360, %367 : vector<2x32xf32>
    %369 = arith.addf %364, %368 : vector<2x32xf32>
    %370 = math.tanh %369 : vector<2x32xf32>
    %cst_95 = arith.constant 1.000000e+00 : f32
    %371 = vector.broadcast %cst_95 : f32 to vector<2x32xf32>
    %372 = arith.subf %371, %361 : vector<2x32xf32>
    %373 = arith.mulf %372, %370 : vector<2x32xf32>
    %374 = arith.mulf %361, %303 : vector<2x32xf32>
    %375 = arith.addf %373, %374 : vector<2x32xf32>
    %376 = vector.shape_cast %375 : vector<2x32xf32> to vector<2x1x32xf32>
    %c0_96 = arith.constant 0 : index
    %377 = arith.index_cast %c4_i32 : i32 to index
    %c0_97 = arith.constant 0 : index
    %378 = vector.load %arg14[%c0_96, %377, %c0_97] : memref<2x8x32xf32, #tpu.memory_space<vmem>>, vector<2x1x32xf32>
    tpu.vector_store %arg14[%c0_96, %377, %c0_97], %376 {strides = array<i32>} : memref<2x8x32xf32, #tpu.memory_space<vmem>>, vector<2x1x32xf32>,
    %c5_i32 = arith.constant 5 : i32
    %c0_98 = arith.constant 0 : index
    %379 = arith.index_cast %c5_i32 : i32 to index
    %c0_99 = arith.constant 0 : index
    %380 = vector.load %arg1[%c0_98, %379, %c0_99] : memref<2x8x32xf32, #tpu.memory_space<vmem>>, vector<2x1x32xf32>
    %381 = vector.shape_cast %380 : vector<2x1x32xf32> to vector<2x32xf32>
    %382 = tpu.concatenate %381, %375 in 1 : vector<2x32xf32>, vector<2x32xf32> -> vector<2x64xf32>
    %383 = arith.truncf %382 : vector<2x64xf32> to vector<2x64xbf16>
    %cst_100 = arith.constant dense<0.000000e+00> : vector<2x32xf32>
    %384 = tpu.matmul %383, %7, %cst_100 {dimension_numbers = #tpu.dot_dimension_numbers<[1], [0], [0], [1], [0, 0, 1, 1], [], []>} : vector<2x64xbf16>, vector<64x32xbf16>, vector<2x32xf32> -> vector<2x32xf32>
    %385 = vector.broadcast %8 : vector<1x32xf32> to vector<2x32xf32>
    %386 = arith.addf %384, %385 : vector<2x32xf32>
    %387 = vector.shape_cast %386 : vector<2x32xf32> to vector<2x1x32xf32>
    %388 = vector.broadcast %387 : vector<2x1x32xf32> to vector<2x8x32xf32>
    %389 = arith.addf %6, %388 : vector<2x8x32xf32>
    %390 = math.tanh %389 : vector<2x8x32xf32>
    %391 = vector.broadcast %10 : vector<1x1x32xf32> to vector<2x8x32xf32>
    %392 = arith.mulf %390, %391 : vector<2x8x32xf32>
    %cst_101 = arith.constant dense<0.000000e+00> : vector<2x8xf32>
    %393 = vector.multi_reduction <add>, %392, %cst_101 [2] : vector<2x8x32xf32> to vector<2x8xf32>
    %394 = vector.broadcast %11 : vector<1x1xf32> to vector<2x8xf32>
    %395 = arith.addf %393, %394 : vector<2x8xf32>
    %cst_102 = arith.constant dense<0xFF800000> : vector<2xf32>
    %396 = vector.multi_reduction <maximumf>, %395, %cst_102 [1] : vector<2x8xf32> to vector<2xf32>
    %397 = vector.shape_cast %396 : vector<2xf32> to vector<2x1xf32>
    %398 = vector.broadcast %397 : vector<2x1xf32> to vector<2x8xf32>
    %399 = arith.subf %395, %398 : vector<2x8xf32>
    %400 = math.exp %399 : vector<2x8xf32>
    %cst_103 = arith.constant dense<0.000000e+00> : vector<2xf32>
    %401 = vector.multi_reduction <add>, %400, %cst_103 [1] : vector<2x8xf32> to vector<2xf32>
    %402 = vector.shape_cast %401 : vector<2xf32> to vector<2x1xf32>
    %403 = tpu.reciprocal %402 {approx = true} : vector<2x1xf32> -> vector<2x1xf32>
    %404 = vector.broadcast %403 : vector<2x1xf32> to vector<2x8xf32>
    %405 = arith.mulf %400, %404 : vector<2x8xf32>
    %406 = vector.shape_cast %405 : vector<2x8xf32> to vector<2x8x1xf32>
    %407 = vector.broadcast %406 : vector<2x8x1xf32> to vector<2x8x32xf32>
    %408 = arith.mulf %407, %4 : vector<2x8x32xf32>
    %cst_104 = arith.constant dense<0.000000e+00> : vector<2x32xf32>
    %409 = vector.multi_reduction <add>, %408, %cst_104 [1] : vector<2x8x32xf32> to vector<2x32xf32>
    %410 = tpu.concatenate %381, %409 in 1 : vector<2x32xf32>, vector<2x32xf32> -> vector<2x64xf32>
    %411 = arith.truncf %410 : vector<2x64xf32> to vector<2x64xbf16>
    %cst_105 = arith.constant dense<0.000000e+00> : vector<2x32xf32>
    %412 = tpu.matmul %411, %12, %cst_105 {dimension_numbers = #tpu.dot_dimension_numbers<[1], [0], [0], [1], [0, 0, 1, 1], [], []>} : vector<2x64xbf16>, vector<64x32xbf16>, vector<2x32xf32> -> vector<2x32xf32>
    %413 = vector.broadcast %13 : vector<1x32xf32> to vector<2x32xf32>
    %414 = arith.addf %412, %413 : vector<2x32xf32>
    %415 = arith.negf %414 : vector<2x32xf32>
    %416 = math.exp %415 : vector<2x32xf32>
    %cst_106 = arith.constant 1.000000e+00 : f32
    %417 = vector.broadcast %cst_106 : f32 to vector<2x32xf32>
    %418 = arith.addf %417, %416 : vector<2x32xf32>
    %419 = arith.divf %417, %418 : vector<2x32xf32>
    %420 = arith.mulf %419, %409 : vector<2x32xf32>
    %421 = tpu.concatenate %420, %375 in 1 : vector<2x32xf32>, vector<2x32xf32> -> vector<2x64xf32>
    %422 = arith.truncf %421 : vector<2x64xf32> to vector<2x64xbf16>
    %cst_107 = arith.constant dense<0.000000e+00> : vector<2x128xf32>
    %423 = tpu.matmul %422, %14, %cst_107 {dimension_numbers = #tpu.dot_dimension_numbers<[1], [0], [0], [1], [0, 0, 1, 1], [], []>} : vector<2x64xbf16>, vector<64x128xbf16>, vector<2x128xf32> -> vector<2x128xf32>
    %424 = vector.extract_strided_slice %423 {offsets = [0, 0], sizes = [2, 64], strides = [1, 1]} : vector<2x128xf32> to vector<2x64xf32>
    %425 = vector.broadcast %15 : vector<1x64xf32> to vector<2x64xf32>
    %426 = arith.addf %424, %425 : vector<2x64xf32>
    %427 = arith.negf %426 : vector<2x64xf32>
    %428 = math.exp %427 : vector<2x64xf32>
    %cst_108 = arith.constant 1.000000e+00 : f32
    %429 = vector.broadcast %cst_108 : f32 to vector<2x64xf32>
    %430 = arith.addf %429, %428 : vector<2x64xf32>
    %431 = arith.divf %429, %430 : vector<2x64xf32>
    %432 = vector.extract_strided_slice %431 {offsets = [0, 0], sizes = [2, 32], strides = [1, 1]} : vector<2x64xf32> to vector<2x32xf32>
    %433 = vector.extract_strided_slice %431 {offsets = [0, 32], sizes = [2, 32], strides = [1, 1]} : vector<2x64xf32> to vector<2x32xf32>
    %434 = vector.extract_strided_slice %423 {offsets = [0, 64], sizes = [2, 32], strides = [1, 1]} : vector<2x128xf32> to vector<2x32xf32>
    %435 = vector.broadcast %16 : vector<1x32xf32> to vector<2x32xf32>
    %436 = arith.addf %434, %435 : vector<2x32xf32>
    %437 = vector.extract_strided_slice %423 {offsets = [0, 96], sizes = [2, 32], strides = [1, 1]} : vector<2x128xf32> to vector<2x32xf32>
    %438 = vector.broadcast %17 : vector<1x32xf32> to vector<2x32xf32>
    %439 = arith.addf %437, %438 : vector<2x32xf32>
    %440 = arith.mulf %432, %439 : vector<2x32xf32>
    %441 = arith.addf %436, %440 : vector<2x32xf32>
    %442 = math.tanh %441 : vector<2x32xf32>
    %cst_109 = arith.constant 1.000000e+00 : f32
    %443 = vector.broadcast %cst_109 : f32 to vector<2x32xf32>
    %444 = arith.subf %443, %433 : vector<2x32xf32>
    %445 = arith.mulf %444, %442 : vector<2x32xf32>
    %446 = arith.mulf %433, %375 : vector<2x32xf32>
    %447 = arith.addf %445, %446 : vector<2x32xf32>
    %448 = vector.shape_cast %447 : vector<2x32xf32> to vector<2x1x32xf32>
    %c0_110 = arith.constant 0 : index
    %449 = arith.index_cast %c5_i32 : i32 to index
    %c0_111 = arith.constant 0 : index
    %450 = vector.load %arg14[%c0_110, %449, %c0_111] : memref<2x8x32xf32, #tpu.memory_space<vmem>>, vector<2x1x32xf32>
    tpu.vector_store %arg14[%c0_110, %449, %c0_111], %448 {strides = array<i32>} : memref<2x8x32xf32, #tpu.memory_space<vmem>>, vector<2x1x32xf32>,
    %c6_i32 = arith.constant 6 : i32
    %c0_112 = arith.constant 0 : index
    %451 = arith.index_cast %c6_i32 : i32 to index
    %c0_113 = arith.constant 0 : index
    %452 = vector.load %arg1[%c0_112, %451, %c0_113] : memref<2x8x32xf32, #tpu.memory_space<vmem>>, vector<2x1x32xf32>
    %453 = vector.shape_cast %452 : vector<2x1x32xf32> to vector<2x32xf32>
    %454 = tpu.concatenate %453, %447 in 1 : vector<2x32xf32>, vector<2x32xf32> -> vector<2x64xf32>
    %455 = arith.truncf %454 : vector<2x64xf32> to vector<2x64xbf16>
    %cst_114 = arith.constant dense<0.000000e+00> : vector<2x32xf32>
    %456 = tpu.matmul %455, %7, %cst_114 {dimension_numbers = #tpu.dot_dimension_numbers<[1], [0], [0], [1], [0, 0, 1, 1], [], []>} : vector<2x64xbf16>, vector<64x32xbf16>, vector<2x32xf32> -> vector<2x32xf32>
    %457 = vector.broadcast %8 : vector<1x32xf32> to vector<2x32xf32>
    %458 = arith.addf %456, %457 : vector<2x32xf32>
    %459 = vector.shape_cast %458 : vector<2x32xf32> to vector<2x1x32xf32>
    %460 = vector.broadcast %459 : vector<2x1x32xf32> to vector<2x8x32xf32>
    %461 = arith.addf %6, %460 : vector<2x8x32xf32>
    %462 = math.tanh %461 : vector<2x8x32xf32>
    %463 = vector.broadcast %10 : vector<1x1x32xf32> to vector<2x8x32xf32>
    %464 = arith.mulf %462, %463 : vector<2x8x32xf32>
    %cst_115 = arith.constant dense<0.000000e+00> : vector<2x8xf32>
    %465 = vector.multi_reduction <add>, %464, %cst_115 [2] : vector<2x8x32xf32> to vector<2x8xf32>
    %466 = vector.broadcast %11 : vector<1x1xf32> to vector<2x8xf32>
    %467 = arith.addf %465, %466 : vector<2x8xf32>
    %cst_116 = arith.constant dense<0xFF800000> : vector<2xf32>
    %468 = vector.multi_reduction <maximumf>, %467, %cst_116 [1] : vector<2x8xf32> to vector<2xf32>
    %469 = vector.shape_cast %468 : vector<2xf32> to vector<2x1xf32>
    %470 = vector.broadcast %469 : vector<2x1xf32> to vector<2x8xf32>
    %471 = arith.subf %467, %470 : vector<2x8xf32>
    %472 = math.exp %471 : vector<2x8xf32>
    %cst_117 = arith.constant dense<0.000000e+00> : vector<2xf32>
    %473 = vector.multi_reduction <add>, %472, %cst_117 [1] : vector<2x8xf32> to vector<2xf32>
    %474 = vector.shape_cast %473 : vector<2xf32> to vector<2x1xf32>
    %475 = tpu.reciprocal %474 {approx = true} : vector<2x1xf32> -> vector<2x1xf32>
    %476 = vector.broadcast %475 : vector<2x1xf32> to vector<2x8xf32>
    %477 = arith.mulf %472, %476 : vector<2x8xf32>
    %478 = vector.shape_cast %477 : vector<2x8xf32> to vector<2x8x1xf32>
    %479 = vector.broadcast %478 : vector<2x8x1xf32> to vector<2x8x32xf32>
    %480 = arith.mulf %479, %4 : vector<2x8x32xf32>
    %cst_118 = arith.constant dense<0.000000e+00> : vector<2x32xf32>
    %481 = vector.multi_reduction <add>, %480, %cst_118 [1] : vector<2x8x32xf32> to vector<2x32xf32>
    %482 = tpu.concatenate %453, %481 in 1 : vector<2x32xf32>, vector<2x32xf32> -> vector<2x64xf32>
    %483 = arith.truncf %482 : vector<2x64xf32> to vector<2x64xbf16>
    %cst_119 = arith.constant dense<0.000000e+00> : vector<2x32xf32>
    %484 = tpu.matmul %483, %12, %cst_119 {dimension_numbers = #tpu.dot_dimension_numbers<[1], [0], [0], [1], [0, 0, 1, 1], [], []>} : vector<2x64xbf16>, vector<64x32xbf16>, vector<2x32xf32> -> vector<2x32xf32>
    %485 = vector.broadcast %13 : vector<1x32xf32> to vector<2x32xf32>
    %486 = arith.addf %484, %485 : vector<2x32xf32>
    %487 = arith.negf %486 : vector<2x32xf32>
    %488 = math.exp %487 : vector<2x32xf32>
    %cst_120 = arith.constant 1.000000e+00 : f32
    %489 = vector.broadcast %cst_120 : f32 to vector<2x32xf32>
    %490 = arith.addf %489, %488 : vector<2x32xf32>
    %491 = arith.divf %489, %490 : vector<2x32xf32>
    %492 = arith.mulf %491, %481 : vector<2x32xf32>
    %493 = tpu.concatenate %492, %447 in 1 : vector<2x32xf32>, vector<2x32xf32> -> vector<2x64xf32>
    %494 = arith.truncf %493 : vector<2x64xf32> to vector<2x64xbf16>
    %cst_121 = arith.constant dense<0.000000e+00> : vector<2x128xf32>
    %495 = tpu.matmul %494, %14, %cst_121 {dimension_numbers = #tpu.dot_dimension_numbers<[1], [0], [0], [1], [0, 0, 1, 1], [], []>} : vector<2x64xbf16>, vector<64x128xbf16>, vector<2x128xf32> -> vector<2x128xf32>
    %496 = vector.extract_strided_slice %495 {offsets = [0, 0], sizes = [2, 64], strides = [1, 1]} : vector<2x128xf32> to vector<2x64xf32>
    %497 = vector.broadcast %15 : vector<1x64xf32> to vector<2x64xf32>
    %498 = arith.addf %496, %497 : vector<2x64xf32>
    %499 = arith.negf %498 : vector<2x64xf32>
    %500 = math.exp %499 : vector<2x64xf32>
    %cst_122 = arith.constant 1.000000e+00 : f32
    %501 = vector.broadcast %cst_122 : f32 to vector<2x64xf32>
    %502 = arith.addf %501, %500 : vector<2x64xf32>
    %503 = arith.divf %501, %502 : vector<2x64xf32>
    %504 = vector.extract_strided_slice %503 {offsets = [0, 0], sizes = [2, 32], strides = [1, 1]} : vector<2x64xf32> to vector<2x32xf32>
    %505 = vector.extract_strided_slice %503 {offsets = [0, 32], sizes = [2, 32], strides = [1, 1]} : vector<2x64xf32> to vector<2x32xf32>
    %506 = vector.extract_strided_slice %495 {offsets = [0, 64], sizes = [2, 32], strides = [1, 1]} : vector<2x128xf32> to vector<2x32xf32>
    %507 = vector.broadcast %16 : vector<1x32xf32> to vector<2x32xf32>
    %508 = arith.addf %506, %507 : vector<2x32xf32>
    %509 = vector.extract_strided_slice %495 {offsets = [0, 96], sizes = [2, 32], strides = [1, 1]} : vector<2x128xf32> to vector<2x32xf32>
    %510 = vector.broadcast %17 : vector<1x32xf32> to vector<2x32xf32>
    %511 = arith.addf %509, %510 : vector<2x32xf32>
    %512 = arith.mulf %504, %511 : vector<2x32xf32>
    %513 = arith.addf %508, %512 : vector<2x32xf32>
    %514 = math.tanh %513 : vector<2x32xf32>
    %cst_123 = arith.constant 1.000000e+00 : f32
    %515 = vector.broadcast %cst_123 : f32 to vector<2x32xf32>
    %516 = arith.subf %515, %505 : vector<2x32xf32>
    %517 = arith.mulf %516, %514 : vector<2x32xf32>
    %518 = arith.mulf %505, %447 : vector<2x32xf32>
    %519 = arith.addf %517, %518 : vector<2x32xf32>
    %520 = vector.shape_cast %519 : vector<2x32xf32> to vector<2x1x32xf32>
    %c0_124 = arith.constant 0 : index
    %521 = arith.index_cast %c6_i32 : i32 to index
    %c0_125 = arith.constant 0 : index
    %522 = vector.load %arg14[%c0_124, %521, %c0_125] : memref<2x8x32xf32, #tpu.memory_space<vmem>>, vector<2x1x32xf32>
    tpu.vector_store %arg14[%c0_124, %521, %c0_125], %520 {strides = array<i32>} : memref<2x8x32xf32, #tpu.memory_space<vmem>>, vector<2x1x32xf32>,
    %c7_i32 = arith.constant 7 : i32
    %c0_126 = arith.constant 0 : index
    %523 = arith.index_cast %c7_i32 : i32 to index
    %c0_127 = arith.constant 0 : index
    %524 = vector.load %arg1[%c0_126, %523, %c0_127] : memref<2x8x32xf32, #tpu.memory_space<vmem>>, vector<2x1x32xf32>
    %525 = vector.shape_cast %524 : vector<2x1x32xf32> to vector<2x32xf32>
    %526 = tpu.concatenate %525, %519 in 1 : vector<2x32xf32>, vector<2x32xf32> -> vector<2x64xf32>
    %527 = arith.truncf %526 : vector<2x64xf32> to vector<2x64xbf16>
    %cst_128 = arith.constant dense<0.000000e+00> : vector<2x32xf32>
    %528 = tpu.matmul %527, %7, %cst_128 {dimension_numbers = #tpu.dot_dimension_numbers<[1], [0], [0], [1], [0, 0, 1, 1], [], []>} : vector<2x64xbf16>, vector<64x32xbf16>, vector<2x32xf32> -> vector<2x32xf32>
    %529 = vector.broadcast %8 : vector<1x32xf32> to vector<2x32xf32>
    %530 = arith.addf %528, %529 : vector<2x32xf32>
    %531 = vector.shape_cast %530 : vector<2x32xf32> to vector<2x1x32xf32>
    %532 = vector.broadcast %531 : vector<2x1x32xf32> to vector<2x8x32xf32>
    %533 = arith.addf %6, %532 : vector<2x8x32xf32>
    %534 = math.tanh %533 : vector<2x8x32xf32>
    %535 = vector.broadcast %10 : vector<1x1x32xf32> to vector<2x8x32xf32>
    %536 = arith.mulf %534, %535 : vector<2x8x32xf32>
    %cst_129 = arith.constant dense<0.000000e+00> : vector<2x8xf32>
    %537 = vector.multi_reduction <add>, %536, %cst_129 [2] : vector<2x8x32xf32> to vector<2x8xf32>
    %538 = vector.broadcast %11 : vector<1x1xf32> to vector<2x8xf32>
    %539 = arith.addf %537, %538 : vector<2x8xf32>
    %cst_130 = arith.constant dense<0xFF800000> : vector<2xf32>
    %540 = vector.multi_reduction <maximumf>, %539, %cst_130 [1] : vector<2x8xf32> to vector<2xf32>
    %541 = vector.shape_cast %540 : vector<2xf32> to vector<2x1xf32>
    %542 = vector.broadcast %541 : vector<2x1xf32> to vector<2x8xf32>
    %543 = arith.subf %539, %542 : vector<2x8xf32>
    %544 = math.exp %543 : vector<2x8xf32>
    %cst_131 = arith.constant dense<0.000000e+00> : vector<2xf32>
    %545 = vector.multi_reduction <add>, %544, %cst_131 [1] : vector<2x8xf32> to vector<2xf32>
    %546 = vector.shape_cast %545 : vector<2xf32> to vector<2x1xf32>
    %547 = tpu.reciprocal %546 {approx = true} : vector<2x1xf32> -> vector<2x1xf32>
    %548 = vector.broadcast %547 : vector<2x1xf32> to vector<2x8xf32>
    %549 = arith.mulf %544, %548 : vector<2x8xf32>
    %550 = vector.shape_cast %549 : vector<2x8xf32> to vector<2x8x1xf32>
    %551 = vector.broadcast %550 : vector<2x8x1xf32> to vector<2x8x32xf32>
    %552 = arith.mulf %551, %4 : vector<2x8x32xf32>
    %cst_132 = arith.constant dense<0.000000e+00> : vector<2x32xf32>
    %553 = vector.multi_reduction <add>, %552, %cst_132 [1] : vector<2x8x32xf32> to vector<2x32xf32>
    %554 = tpu.concatenate %525, %553 in 1 : vector<2x32xf32>, vector<2x32xf32> -> vector<2x64xf32>
    %555 = arith.truncf %554 : vector<2x64xf32> to vector<2x64xbf16>
    %cst_133 = arith.constant dense<0.000000e+00> : vector<2x32xf32>
    %556 = tpu.matmul %555, %12, %cst_133 {dimension_numbers = #tpu.dot_dimension_numbers<[1], [0], [0], [1], [0, 0, 1, 1], [], []>} : vector<2x64xbf16>, vector<64x32xbf16>, vector<2x32xf32> -> vector<2x32xf32>
    %557 = vector.broadcast %13 : vector<1x32xf32> to vector<2x32xf32>
    %558 = arith.addf %556, %557 : vector<2x32xf32>
    %559 = arith.negf %558 : vector<2x32xf32>
    %560 = math.exp %559 : vector<2x32xf32>
    %cst_134 = arith.constant 1.000000e+00 : f32
    %561 = vector.broadcast %cst_134 : f32 to vector<2x32xf32>
    %562 = arith.addf %561, %560 : vector<2x32xf32>
    %563 = arith.divf %561, %562 : vector<2x32xf32>
    %564 = arith.mulf %563, %553 : vector<2x32xf32>
    %565 = tpu.concatenate %564, %519 in 1 : vector<2x32xf32>, vector<2x32xf32> -> vector<2x64xf32>
    %566 = arith.truncf %565 : vector<2x64xf32> to vector<2x64xbf16>
    %cst_135 = arith.constant dense<0.000000e+00> : vector<2x128xf32>
    %567 = tpu.matmul %566, %14, %cst_135 {dimension_numbers = #tpu.dot_dimension_numbers<[1], [0], [0], [1], [0, 0, 1, 1], [], []>} : vector<2x64xbf16>, vector<64x128xbf16>, vector<2x128xf32> -> vector<2x128xf32>
    %568 = vector.extract_strided_slice %567 {offsets = [0, 0], sizes = [2, 64], strides = [1, 1]} : vector<2x128xf32> to vector<2x64xf32>
    %569 = vector.broadcast %15 : vector<1x64xf32> to vector<2x64xf32>
    %570 = arith.addf %568, %569 : vector<2x64xf32>
    %571 = arith.negf %570 : vector<2x64xf32>
    %572 = math.exp %571 : vector<2x64xf32>
    %cst_136 = arith.constant 1.000000e+00 : f32
    %573 = vector.broadcast %cst_136 : f32 to vector<2x64xf32>
    %574 = arith.addf %573, %572 : vector<2x64xf32>
    %575 = arith.divf %573, %574 : vector<2x64xf32>
    %576 = vector.extract_strided_slice %575 {offsets = [0, 0], sizes = [2, 32], strides = [1, 1]} : vector<2x64xf32> to vector<2x32xf32>
    %577 = vector.extract_strided_slice %575 {offsets = [0, 32], sizes = [2, 32], strides = [1, 1]} : vector<2x64xf32> to vector<2x32xf32>
    %578 = vector.extract_strided_slice %567 {offsets = [0, 64], sizes = [2, 32], strides = [1, 1]} : vector<2x128xf32> to vector<2x32xf32>
    %579 = vector.broadcast %16 : vector<1x32xf32> to vector<2x32xf32>
    %580 = arith.addf %578, %579 : vector<2x32xf32>
    %581 = vector.extract_strided_slice %567 {offsets = [0, 96], sizes = [2, 32], strides = [1, 1]} : vector<2x128xf32> to vector<2x32xf32>
    %582 = vector.broadcast %17 : vector<1x32xf32> to vector<2x32xf32>
    %583 = arith.addf %581, %582 : vector<2x32xf32>
    %584 = arith.mulf %576, %583 : vector<2x32xf32>
    %585 = arith.addf %580, %584 : vector<2x32xf32>
    %586 = math.tanh %585 : vector<2x32xf32>
    %cst_137 = arith.constant 1.000000e+00 : f32
    %587 = vector.broadcast %cst_137 : f32 to vector<2x32xf32>
    %588 = arith.subf %587, %577 : vector<2x32xf32>
    %589 = arith.mulf %588, %586 : vector<2x32xf32>
    %590 = arith.mulf %577, %519 : vector<2x32xf32>
    %591 = arith.addf %589, %590 : vector<2x32xf32>
    %592 = vector.shape_cast %591 : vector<2x32xf32> to vector<2x1x32xf32>
    %c0_138 = arith.constant 0 : index
    %593 = arith.index_cast %c7_i32 : i32 to index
    %c0_139 = arith.constant 0 : index
    %594 = vector.load %arg14[%c0_138, %593, %c0_139] : memref<2x8x32xf32, #tpu.memory_space<vmem>>, vector<2x1x32xf32>
    tpu.vector_store %arg14[%c0_138, %593, %c0_139], %592 {strides = array<i32>} : memref<2x8x32xf32, #tpu.memory_space<vmem>>, vector<2x1x32xf32>,
    %c8_i32 = arith.constant 8 : i32
    %c0_140 = arith.constant 0 : index
    %c0_141 = arith.constant 0 : index
    %595 = vector.load %arg15[%c0_140, %c0_141] : memref<2x32xf32, #tpu.memory_space<vmem>>, vector<2x32xf32>
    tpu.vector_store %arg15[%c0_140, %c0_141], %591 {strides = array<i32>} : memref<2x32xf32, #tpu.memory_space<vmem>>, vector<2x32xf32>,
    return
  }
  func.func @transform_0(%arg0: i32) -> (i32, i32, i32) {
    %c0_i32 = arith.constant 0 : i32
    %c0_i32_0 = arith.constant 0 : i32
    %c0_i32_1 = arith.constant 0 : i32
    return %c0_i32, %arg0, %c0_i32_0 : i32, i32, i32
  }
  func.func @transform_1(%arg0: i32) -> (i32, i32, i32) {
    %c0_i32 = arith.constant 0 : i32
    %c0_i32_0 = arith.constant 0 : i32
    %c0_i32_1 = arith.constant 0 : i32
    %c0_i32_2 = arith.constant 0 : i32
    return %c0_i32, %c0_i32_0, %c0_i32_1 : i32, i32, i32
  }
  func.func @transform_2(%arg0: i32) -> (i32, i32, i32) {
    %c0_i32 = arith.constant 0 : i32
    %c0_i32_0 = arith.constant 0 : i32
    %c0_i32_1 = arith.constant 0 : i32
    %c0_i32_2 = arith.constant 0 : i32
    return %c0_i32, %c0_i32_0, %c0_i32_1 : i32, i32, i32
  }
  func.func @transform_3(%arg0: i32) -> (i32, i32) {
    %c0_i32 = arith.constant 0 : i32
    %c0_i32_0 = arith.constant 0 : i32
    %c0_i32_1 = arith.constant 0 : i32
    return %c0_i32, %c0_i32_0 : i32, i32
  }
  func.func @transform_4(%arg0: i32) -> (i32, i32) {
    %c0_i32 = arith.constant 0 : i32
    %c0_i32_0 = arith.constant 0 : i32
    %c0_i32_1 = arith.constant 0 : i32
    return %c0_i32, %c0_i32_0 : i32, i32
  }
  func.func @transform_5(%arg0: i32) -> (i32, i32) {
    %c0_i32 = arith.constant 0 : i32
    %c0_i32_0 = arith.constant 0 : i32
    %c0_i32_1 = arith.constant 0 : i32
    return %c0_i32, %c0_i32_0 : i32, i32
  }
  func.func @transform_6(%arg0: i32) -> (i32, i32) {
    %c0_i32 = arith.constant 0 : i32
    %c0_i32_0 = arith.constant 0 : i32
    %c0_i32_1 = arith.constant 0 : i32
    return %c0_i32, %c0_i32_0 : i32, i32
  }
  func.func @transform_7(%arg0: i32) -> (i32, i32) {
    %c0_i32 = arith.constant 0 : i32
    %c0_i32_0 = arith.constant 0 : i32
    %c0_i32_1 = arith.constant 0 : i32
    return %c0_i32, %c0_i32_0 : i32, i32
  }
  func.func @transform_8(%arg0: i32) -> (i32, i32) {
    %c0_i32 = arith.constant 0 : i32
    %c0_i32_0 = arith.constant 0 : i32
    %c0_i32_1 = arith.constant 0 : i32
    return %c0_i32, %c0_i32_0 : i32, i32
  }
  func.func @transform_9(%arg0: i32) -> (i32, i32) {
    %c0_i32 = arith.constant 0 : i32
    %c0_i32_0 = arith.constant 0 : i32
    %c0_i32_1 = arith.constant 0 : i32
    return %c0_i32, %c0_i32_0 : i32, i32
  }
  func.func @transform_10(%arg0: i32) -> (i32, i32) {
    %c0_i32 = arith.constant 0 : i32
    %c0_i32_0 = arith.constant 0 : i32
    %c0_i32_1 = arith.constant 0 : i32
    return %c0_i32, %c0_i32_0 : i32, i32
  }
  func.func @transform_11(%arg0: i32) -> (i32, i32) {
    %c0_i32 = arith.constant 0 : i32
    %c0_i32_0 = arith.constant 0 : i32
    %c0_i32_1 = arith.constant 0 : i32
    return %c0_i32, %c0_i32_0 : i32, i32
  }
  func.func @transform_12(%arg0: i32) -> (i32, i32) {
    %c0_i32 = arith.constant 0 : i32
    %c0_i32_0 = arith.constant 0 : i32
    %c0_i32_1 = arith.constant 0 : i32
    return %c0_i32, %c0_i32_0 : i32, i32
  }
  func.func @transform_13(%arg0: i32) -> (i32, i32, i32) {
    %c0_i32 = arith.constant 0 : i32
    %c0_i32_0 = arith.constant 0 : i32
    %c0_i32_1 = arith.constant 0 : i32
    return %c0_i32, %arg0, %c0_i32_0 : i32, i32, i32
  }
}

</mosaic_0001>

<llo_original>
// kernel: tpu_custom_call.1
$region0: #{tpu_custom_call.1}
  #allocation0 [shape = 'u32[]', space=smem, size = 0x4, offset = 0x4, fixed_abs, tag = 'smem constant byte address 0x4 - core index']
  #allocation1 [shape = 'u32[72,128]{1,0:T(1,128)}', space=vmem, size = 0x9000, scoped, tag = 'internal scratch']
  #allocation2 [shape = 'f32[2,32]{1,0:T(2,128)}', space=vmem, size = 0x400, scoped, tag = 'scratch operand']
  #allocation3 [shape = 'f32[1,1]{1,0:T(1,128)S(1)}', space=vmem, size = 0x200, scoped, tag = 'scoped memory for tpu_custom_call.1']
  %s0 = inlined_call_operand.vmem [shape: f32[2,8,32], index: 0, kind: input, shape index: {}]
  %s1 = inlined_call_operand.vmem [shape: bf16[2,8,32], index: 1, kind: input, shape index: {}]
  %s2 = inlined_call_operand.vmem [shape: bf16[2,8,32], index: 2, kind: input, shape index: {}]
  %s3 = inlined_call_operand.vmem [shape: bf16[64,32], index: 3, kind: input, shape index: {}]
  %s4 = inlined_call_operand.vmem [shape: f32[1,32], index: 4, kind: input, shape index: {}]
  %s5 = inlined_call_operand.vmem [shape: f32[1,32], index: 5, kind: input, shape index: {}]
  %s6 = inlined_call_operand.<no memory space> [shape: f32[1,1], index: 6, kind: input, shape index: {}]
  %s7 = inlined_call_operand.vmem [shape: bf16[64,32], index: 7, kind: input, shape index: {}]
  %s8 = inlined_call_operand.vmem [shape: f32[1,32], index: 8, kind: input, shape index: {}]
  %s9 = inlined_call_operand.vmem [shape: bf16[64,128], index: 9, kind: input, shape index: {}]
  %s10 = inlined_call_operand.vmem [shape: f32[1,64], index: 10, kind: input, shape index: {}]
  %s11 = inlined_call_operand.vmem [shape: f32[1,32], index: 11, kind: input, shape index: {}]
  %s12 = inlined_call_operand.vmem [shape: f32[1,32], index: 12, kind: input, shape index: {}]
  %s13 = inlined_call_operand.hbm [shape: f32[2,8,32], index: 13, kind: output, shape index: {}]
  %s14 = sld [smem:[#allocation0]]
  $region66: #{tpu_custom_call.1} parent=0
    _
  %s16 = ssub.s32 1, %s14
  %s17 = scalar_select 0, %s16, %s14
  %v18 = vstv %s6
  %19 = vst [vmem:[#allocation3] sm:$0x1] %v18
  $region1: #{tpu_custom_call.1} parent=0
    #allocation4 [shape = 'u8[8192]{0}', space=vmem, size = 0x2000, scoped, tag = 'output window, operand 0, single buffered']
    #allocation5 [shape = 's32[1]{0}', space=sflag, size = 0x4, scoped, tag = 'scoped memory for tpu_custom_call.1']
    %20 = vsyncpa [#allocation5], 0
    // Predicated region
    $region2: #{tpu_custom_call.1} parent=1 // pred_check
      _
    $region3: #{tpu_custom_call.1} parent=1 // pred_check_branch
      %22 = sbr.rel (0) target = $region5
    $region4: #{tpu_custom_call.1} parent=1 // pred_region
      _
    $region5: #{tpu_custom_call.1} parent=1 // pred_fallthru
      _
    // Predicated region
    $region6: #{tpu_custom_call.1} parent=1 // pred_check
      _
    $region7: #{tpu_custom_call.1} parent=1 // pred_check_branch
      %24 = sbr.rel (0) target = $region9
    $region8: #{tpu_custom_call.1} parent=1 // pred_region
      _
    $region9: #{tpu_custom_call.1} parent=1 // pred_fallthru
      _
    // Predicated region
    $region10: #{tpu_custom_call.1} parent=1 // pred_check
      _
    $region11: #{tpu_custom_call.1} parent=1 // pred_check_branch
      %26 = sbr.rel (0) target = $region13
    $region12: #{tpu_custom_call.1} parent=1 // pred_region
      _
    $region13: #{tpu_custom_call.1} parent=1 // pred_fallthru
      _
    // Predicated region
    $region14: #{tpu_custom_call.1} parent=1 // pred_check
      _
    $region15: #{tpu_custom_call.1} parent=1 // pred_check_branch
      %28 = sbr.rel (0) target = $region17
    $region16: #{tpu_custom_call.1} parent=1 // pred_region
      _
    $region17: #{tpu_custom_call.1} parent=1 // pred_fallthru
      _
    // Predicated region
    $region18: #{tpu_custom_call.1} parent=1 // pred_check
      _
    $region19: #{tpu_custom_call.1} parent=1 // pred_check_branch
      %30 = sbr.rel (0) target = $region21
    $region20: #{tpu_custom_call.1} parent=1 // pred_region
      _
    $region21: #{tpu_custom_call.1} parent=1 // pred_fallthru
      _
    // Predicated region
    $region22: #{tpu_custom_call.1} parent=1 // pred_check
      _
    $region23: #{tpu_custom_call.1} parent=1 // pred_check_branch
      %32 = sbr.rel (0) target = $region25
    $region24: #{tpu_custom_call.1} parent=1 // pred_region
      _
    $region25: #{tpu_custom_call.1} parent=1 // pred_fallthru
      _
    // Predicated region
    $region26: #{tpu_custom_call.1} parent=1 // pred_check
      _
    $region27: #{tpu_custom_call.1} parent=1 // pred_check_branch
      %34 = sbr.rel (0) target = $region29
    $region28: #{tpu_custom_call.1} parent=1 // pred_region
      _
    $region29: #{tpu_custom_call.1} parent=1 // pred_fallthru
      _
    // Predicated region
    $region30: #{tpu_custom_call.1} parent=1 // pred_check
      _
    $region31: #{tpu_custom_call.1} parent=1 // pred_check_branch
      %36 = sbr.rel (0) target = $region33
    $region32: #{tpu_custom_call.1} parent=1 // pred_region
      _
    $region33: #{tpu_custom_call.1} parent=1 // pred_fallthru
      _
    // Predicated region
    $region34: #{tpu_custom_call.1} parent=1 // pred_check
      _
    $region35: #{tpu_custom_call.1} parent=1 // pred_check_branch
      %38 = sbr.rel (0) target = $region37
    $region36: #{tpu_custom_call.1} parent=1 // pred_region
      _
    $region37: #{tpu_custom_call.1} parent=1 // pred_fallthru
      _
    // Predicated region
    $region38: #{tpu_custom_call.1} parent=1 // pred_check
      _
    $region39: #{tpu_custom_call.1} parent=1 // pred_check_branch
      %40 = sbr.rel (0) target = $region41
    $region40: #{tpu_custom_call.1} parent=1 // pred_region
      _
    $region41: #{tpu_custom_call.1} parent=1 // pred_fallthru
      _
    // Predicated region
    $region42: #{tpu_custom_call.1} parent=1 // pred_check
      _
    $region43: #{tpu_custom_call.1} parent=1 // pred_check_branch
      %42 = sbr.rel (0) target = $region45
    $region44: #{tpu_custom_call.1} parent=1 // pred_region
      _
    $region45: #{tpu_custom_call.1} parent=1 // pred_fallthru
      _
    // Predicated region
    $region46: #{tpu_custom_call.1} parent=1 // pred_check
      _
    $region47: #{tpu_custom_call.1} parent=1 // pred_check_branch
      %44 = sbr.rel (0) target = $region49
    $region48: #{tpu_custom_call.1} parent=1 // pred_region
      _
    $region49: #{tpu_custom_call.1} parent=1 // pred_fallthru
      _
    // Predicated region
    $region50: #{tpu_custom_call.1} parent=1 // pred_check
      _
    $region51: #{tpu_custom_call.1} parent=1 // pred_check_branch
      %46 = sbr.rel (0) target = $region53
    $region52: #{tpu_custom_call.1} parent=1 // pred_region
      _
    $region53: #{tpu_custom_call.1} parent=1 // pred_fallthru
      _
    %p48 = scmp.eq.s32.totalorder 0, 0
    // Predicated region
    $region54: #{tpu_custom_call.1} parent=1 // pred_check
      %p49 = pneg %p48
    $region55: #{tpu_custom_call.1} parent=1 // pred_check_branch
      %51 = sbr.rel (%p49) target = $region57
    $region56: #{tpu_custom_call.1} parent=1 // pred_region
      %vm52 = vcmask 254976
      %53 = vst.msk [vmem:[#allocation2] sm:$0x3] %vm52, 0.0
    $region57: #{tpu_custom_call.1} parent=1 // pred_fallthru
      _
    %v54 = vld [vmem:[%s1] sm:$0xf]
    %v55 = vld [vmem:[%s1 + $0x4] sm:$0xf]
    %v56 = vunpack.c.l.bf16 %v54
    %v57 = vunpack.c.l.bf16 %v55
    %v58 = vld [vmem:[%s2] sm:$0xf]
    %v59 = vld [vmem:[%s2 + $0x4] sm:$0xf]
    %v60 = vunpack.c.l.bf16 %v58
    %v61 = vunpack.c.l.bf16 %v59
    %v62 = vld [vmem:[%s3] sm:$0xf]
    %v63 = vld [vmem:[%s3 + $0x4] sm:$0xf]
    %v64 = vld [vmem:[%s3 + $0x8] sm:$0xf]
    %v65 = vld [vmem:[%s3 + $0xc] sm:$0xf]
    %v66 = vld [vmem:[%s3 + $0x10] sm:$0xf]
    %v67 = vld [vmem:[%s3 + $0x14] sm:$0xf]
    %v68 = vld [vmem:[%s3 + $0x18] sm:$0xf]
    %v69 = vld [vmem:[%s3 + $0x1c] sm:$0xf]
    %v70 = vld [vmem:[%s4] sm:$0x1]
    %v71 = vld [vmem:[%s5] sm:$0x1]
    %v72 = vld [vmem:[#allocation3] sm:$0x1]
    %v73 = vld [vmem:[%s7] sm:$0xf]
    %v74 = vld [vmem:[%s7 + $0x4] sm:$0xf]
    %v75 = vld [vmem:[%s7 + $0x8] sm:$0xf]
    %v76 = vld [vmem:[%s7 + $0xc] sm:$0xf]
    %v77 = vld [vmem:[%s7 + $0x10] sm:$0xf]
    %v78 = vld [vmem:[%s7 + $0x14] sm:$0xf]
    %v79 = vld [vmem:[%s7 + $0x18] sm:$0xf]
    %v80 = vld [vmem:[%s7 + $0x1c] sm:$0xf]
    %v81 = vld [vmem:[%s8] sm:$0x1]
    %v82 = vld [vmem:[%s9] sm:$0xf]
    %v83 = vld [vmem:[%s9 + $0x4] sm:$0xf]
    %v84 = vld [vmem:[%s9 + $0x8] sm:$0xf]
    %v85 = vld [vmem:[%s9 + $0xc] sm:$0xf]
    %v86 = vld [vmem:[%s9 + $0x10] sm:$0xf]
    %v87 = vld [vmem:[%s9 + $0x14] sm:$0xf]
    %v88 = vld [vmem:[%s9 + $0x18] sm:$0xf]
    %v89 = vld [vmem:[%s9 + $0x1c] sm:$0xf]
    %v90 = vld [vmem:[%s10] sm:$0x1]
    %v91 = vld [vmem:[%s11] sm:$0x1]
    %v92 = vld [vmem:[%s12] sm:$0x1]
    %v93 = vld [vmem:[#allocation2] sm:$0x3]
    %v94 = vld [vmem:[%s0] sm:$0x1]
    %v95 = vld [vmem:[%s0 + $0x8] sm:$0x1]
    %v98 = vrot.slane %v95, 7
    %vm99 = vcmask 1041409
    %v100 = vsel %vm99, %v98, %v94
    %103 = vrot.lane.b32.xlu0 %v93, 32
    %v104 = vpop.permute.xlu0 %103
    %vm106 = vcmask 261120
    %v107 = vsel %vm106, %v100, %v104
    %v108 = vpack.c.bf16 %v107, %v107
    %v110 = vperm.slane %v70, 0
    %v120 = vunpack.c.l.b16 %v62
    %v121 = vunpack.c.l.b16 %v63
    %v122 = vunpack.c.l.b16 %v64
    %v123 = vunpack.c.l.b16 %v65
    %v124 = vunpack.c.l.b16 %v66
    %v125 = vunpack.c.l.b16 %v67
    %v126 = vunpack.c.l.b16 %v68
    %v127 = vunpack.c.l.b16 %v69
    %v128 = vpack.c.b16 %v121, %v120
    %v129 = vpack.c.b16 %v123, %v122
    %v130 = vpack.c.b16 %v125, %v124
    %v131 = vpack.c.b16 %v127, %v126
    %vm136 = vcmask 523264
    %v138 = vsel %vm136, %v108, 0
    %140 = vmatpush.bf16.msra.mxu0 0
    %141 = vmatpush.bf16.msra.mxu0 0
    %142 = vmatpush.bf16.msra.mxu0 0
    %143 = vmatpush.bf16.msra.mxu0 0
    %144 = vmatpush.bf16.msra.mxu0 %v131
    %145 = vmatpush.bf16.msra.mxu0 %v130
    %146 = vmatpush.bf16.msra.mxu0 %v129
    %147 = vmatpush.bf16.msra.mxu0 %v128
    %148 = vmatmul.bf16.gmra.mxu0 %v138
    %v149 = vpop.f32.mrf.mxu0
    %v150 = vadd.f32 %v110, %v149
    %v151 = vpop.f32.mrf.mxu0
    %152 = vdwg.mxu0
    %v154 = vrot.slane %v150, 1
    %v155 = vperm.slane %v150, 0
    %v156 = vperm.slane %v154, 0
    %v159 = vadd.f32 %v60, %v155
    %v160 = vadd.f32 %v61, %v156
    %v161 = vtanh.pop %v159
    %v162 = vtanh.pop %v160
    %v164 = vperm.slane %v71, 0
    %v166 = vmul.f32 %v161, %v164
    %v167 = vmul.f32 %v162, %v164
    %v168 = vsel %vm106, %v166, 0.0
    %169 = vadd.xlane.f32.xlu0 %v168
    %v170 = vpop.xlane.xlu0 %169
    %v171 = vsel %vm106, %v167, 0.0
    %172 = vadd.xlane.f32.xlu0 %v171
    %v173 = vpop.xlane.xlu0 %172
    %v175 = vperm.slane %v72, 0
    %176 = vset.pattern.permute.xlu0 0
    %177 = vperm.xlu0 %176, %v175
    %v178 = vpop.permute.xlu0 %177
    %v180 = vadd.f32 %v170, %v178
    %v181 = vadd.f32 %v173, %v178
    %v184 = vlaneseq
    %v185 = vand.u32 %v184, 127
    %v186 = vperm.slane %v180, %v185
    %v187 = vperm.slane %v181, %v185
    %v188 = vsel %vm99, %v187, %v186
    %vm190 = vcmask 58368
    %v191 = vsel %vm190, %v188, -inf
    %192 = vmax.xlane.f32.xlu0 %v191
    %v193 = vpop.xlane.xlu0 %192
    %v195 = vperm.slane %v193, 0
    %v196 = vperm.slane %v193, 1
    %v199 = vsub.f32 %v180, %v195
    %v200 = vsub.f32 %v181, %v196
    %v201 = vmul.f32 %v199, 1.442695
    %v202 = vpow.pop %v201
    %v203 = vmul.f32 %v200, 1.442695
    %v204 = vpow.pop %v203
    %207 = vset.pattern.permute.xlu0 0
    %208 = vperm.xlu0 %207, %v202
    %v209 = vpop.permute.xlu0 %208
    %210 = vset.pattern.permute.xlu0 0
    %211 = vperm.xlu0 %210, %v204
    %v212 = vpop.permute.xlu0 %211
    %v213 = vperm.slane %v209, %v185
    %v214 = vperm.slane %v212, %v185
    %v215 = vsel %vm99, %v214, %v213
    %v217 = vsel %vm190, %v215, 0.0
    %218 = vadd.xlane.f32.xlu0 %v217
    %v219 = vpop.xlane.xlu0 %218
    %v220 = vrcp.pop %v219
    %v222 = vperm.slane %v220, 0
    %v223 = vperm.slane %v220, 1
    %v226 = vmul.f32 %v202, %v222
    %v227 = vmul.f32 %v204, %v223
    %229 = vset.pattern.permute.xlu0 0
    %230 = vperm.xlu0 %229, %v226
    %v231 = vpop.permute.xlu0 %230
    %234 = vset.pattern.permute.xlu0 0
    %235 = vperm.xlu0 %234, %v227
    %v236 = vpop.permute.xlu0 %235
    %v238 = vmul.f32 %v231, %v56
    %v239 = vmul.f32 %v236, %v57
    %v240 = vsel %vm106, %v238, 0.0
    %v241 = vrot.slane %v240, 4
    %v242 = vadd.f32 %v240, %v241
    %v243 = vrot.slane %v242, 2
    %v244 = vadd.f32 %v242, %v243
    %v245 = vrot.slane %v244, 1
    %v246 = vadd.f32 %v244, %v245
    %v247 = vsel %vm106, %v239, 0.0
    %v248 = vrot.slane %v247, 4
    %v249 = vadd.f32 %v247, %v248
    %v250 = vrot.slane %v249, 2
    %v251 = vadd.f32 %v249, %v250
    %v252 = vrot.slane %v251, 1
    %v253 = vadd.f32 %v251, %v252
    %v256 = vsel %vm99, %v253, %v246
    %257 = vrot.lane.b32.xlu0 %v256, 32
    %v258 = vpop.permute.xlu0 %257
    %v260 = vsel %vm106, %v100, %v258
    %v261 = vpack.c.bf16 %v260, %v260
    %v263 = vperm.slane %v81, 0
    %v273 = vunpack.c.l.b16 %v73
    %v274 = vunpack.c.l.b16 %v74
    %v275 = vunpack.c.l.b16 %v75
    %v276 = vunpack.c.l.b16 %v76
    %v277 = vunpack.c.l.b16 %v77
    %v278 = vunpack.c.l.b16 %v78
    %v279 = vunpack.c.l.b16 %v79
    %v280 = vunpack.c.l.b16 %v80
    %v281 = vpack.c.b16 %v274, %v273
    %v282 = vpack.c.b16 %v276, %v275
    %v283 = vpack.c.b16 %v278, %v277
    %v284 = vpack.c.b16 %v280, %v279
    %v290 = vsel %vm136, %v261, 0
    %292 = vmatpush.bf16.msra.mxu0 0
    %293 = vmatpush.bf16.msra.mxu0 0
    %294 = vmatpush.bf16.msra.mxu0 0
    %295 = vmatpush.bf16.msra.mxu0 0
    %296 = vmatpush.bf16.msra.mxu0 %v284
    %297 = vmatpush.bf16.msra.mxu0 %v283
    %298 = vmatpush.bf16.msra.mxu0 %v282
    %299 = vmatpush.bf16.msra.mxu0 %v281
    %300 = vmatmul.bf16.gmra.mxu0 %v290
    %v301 = vpop.f32.mrf.mxu0
    %v302 = vadd.f32 %v263, %v301
    %v303 = vpop.f32.mrf.mxu0
    %304 = vdwg.mxu0
    %v305 = vxor.u32 %v302, 2147483648
    %v306 = vmul.f32 %v305, 1.442695
    %v307 = vpow.pop %v306
    %v308 = vadd.f32 %v307, 1.0
    %v309 = vrcp.pop %v308
    %v310 = vmul.f32 %v308, %v309
    %v311 = vsub.f32 1.0, %v310
    %v312 = vmul.f32 %v309, %v311
    %v313 = vadd.f32 %v309, %v312
    %vm314 = vweird.f32 %v308
    %vm315 = vweird.f32 %v309
    %vm316 = vmor %vm314, %vm315
    %v317 = vsel %vm316, %v309, %v313
    %v318 = vand.u32 2147483647, %v308
    %vm319 = vcmp.eq.f32.partialorder %v318, 8.507059e+37
    %v320 = vand.u32 %v308, 2147483648
    %v321 = vor.u32 1.1754944e-38, %v320
    %v322 = vsel %vm319, %v321, %v317
    %v323 = vmul.f32 1.0, %v322
    %v325 = vmul.f32 %v323, %v256
    %v326 = vsel %vm106, %v325, %v104
    %v327 = vpack.c.bf16 %v326, %v326
    %v336 = vunpack.c.l.b16 %v82
    %v337 = vunpack.c.l.b16 %v83
    %v338 = vunpack.c.l.b16 %v84
    %v339 = vunpack.c.l.b16 %v85
    %v340 = vunpack.c.l.b16 %v86
    %v341 = vunpack.c.l.b16 %v87
    %v342 = vunpack.c.l.b16 %v88
    %v343 = vunpack.c.l.b16 %v89
    %v344 = vpack.c.b16 %v337, %v336
    %v345 = vpack.c.b16 %v339, %v338
    %v346 = vpack.c.b16 %v341, %v340
    %v347 = vpack.c.b16 %v343, %v342
    %v353 = vsel %vm136, %v327, 0
    %355 = vmatpush.bf16.msra.mxu0 0
    %356 = vmatpush.bf16.msra.mxu0 0
    %357 = vmatpush.bf16.msra.mxu0 0
    %358 = vmatpush.bf16.msra.mxu0 0
    %359 = vmatpush.bf16.msra.mxu0 %v347
    %360 = vmatpush.bf16.msra.mxu0 %v346
    %361 = vmatpush.bf16.msra.mxu0 %v345
    %362 = vmatpush.bf16.msra.mxu0 %v344
    %363 = vmatmul.bf16.gmra.mxu0 %v353
    %v364 = vpop.f32.mrf.mxu0
    %v365 = vadd.f32 0.0, %v364
    %v366 = vpop.f32.mrf.mxu0
    %367 = vdwg.mxu0
    %v369 = vperm.slane %v90, 0
    %v371 = vadd.f32 %v365, %v369
    %v372 = vxor.u32 %v371, 2147483648
    %v373 = vmul.f32 %v372, 1.442695
    %v374 = vpow.pop %v373
    %v375 = vadd.f32 %v374, 1.0
    %v376 = vrcp.pop %v375
    %v377 = vmul.f32 %v375, %v376
    %v378 = vsub.f32 1.0, %v377
    %v379 = vmul.f32 %v376, %v378
    %v380 = vadd.f32 %v376, %v379
    %vm381 = vweird.f32 %v375
    %vm382 = vweird.f32 %v376
    %vm383 = vmor %vm381, %vm382
    %v384 = vsel %vm383, %v376, %v380
    %v385 = vand.u32 2147483647, %v375
    %vm386 = vcmp.eq.f32.partialorder %v385, 8.507059e+37
    %v387 = vand.u32 %v375, 2147483648
    %v388 = vor.u32 1.1754944e-38, %v387
    %v389 = vsel %vm386, %v388, %v384
    %v390 = vmul.f32 1.0, %v389
    %v392 = vperm.slane %v91, 0
    %393 = vrot.lane.b32.xlu0 %v392, 64
    %v394 = vpop.permute.xlu0 %393
    %v396 = vadd.f32 %v365, %v394
    %v398 = vperm.slane %v92, 0
    %399 = vrot.lane.b32.xlu0 %v398, 96
    %v400 = vpop.permute.xlu0 %399
    %v402 = vadd.f32 %v365, %v400
    %404 = vrot.lane.b32.xlu0 %v402, 32
    %v405 = vpop.permute.xlu0 %404
    %v407 = vmul.f32 %v390, %v405
    %409 = vrot.lane.b32.xlu0 %v407, 64
    %v410 = vpop.permute.xlu0 %409
    %v412 = vadd.f32 %v396, %v410
    %v413 = vtanh.pop %v412
    %v414 = vsub.f32 1.0, %v390
    %416 = vrot.lane.b32.xlu0 %v413, 96
    %v417 = vpop.permute.xlu0 %416
    %v419 = vmul.f32 %v414, %v417
    %v420 = vmul.f32 %v390, %v104
    %v421 = vadd.f32 %v419, %v420
    %v423 = vrot.slane %v421, 1
    %v424 = vperm.slane %v421, 0
    %v425 = vperm.slane %v423, 0
    %426 = vrot.lane.b32.xlu0 %v424, 96
    %v427 = vpop.permute.xlu0 %426
    %428 = vrot.lane.b32.xlu0 %v425, 96
    %v429 = vpop.permute.xlu0 %428
    %vm432 = vcmask 253952
    %433 = vst.msk [vmem:[#allocation4] sm:$0x1] %vm432, %v427
    %434 = vst.msk [vmem:[#allocation4 + $0x8] sm:$0x1] %vm432, %v429
    %v435 = vld [vmem:[%s0 + $0x1] sm:$0x1]
    %v436 = vld [vmem:[%s0 + $0x9] sm:$0x1]
    %v439 = vrot.slane %v436, 7
    %v440 = vsel %vm99, %v439, %v435
    %v442 = vsel %vm106, %v440, %v421
    %v443 = vpack.c.bf16 %v442, %v442
    %v445 = vsel %vm136, %v443, 0
    %447 = vmatpush.bf16.msra.mxu0 0
    %448 = vmatpush.bf16.msra.mxu0 0
    %449 = vmatpush.bf16.msra.mxu0 0
    %450 = vmatpush.bf16.msra.mxu0 0
    %451 = vmatpush.bf16.msra.mxu0 %v131
    %452 = vmatpush.bf16.msra.mxu0 %v130
    %453 = vmatpush.bf16.msra.mxu0 %v129
    %454 = vmatpush.bf16.msra.mxu0 %v128
    %455 = vmatmul.bf16.gmra.mxu0 %v445
    %v456 = vpop.f32.mrf.mxu0
    %v457 = vadd.f32 %v110, %v456
    %v458 = vpop.f32.mrf.mxu0
    %459 = vdwg.mxu0
    %v461 = vrot.slane %v457, 1
    %v462 = vperm.slane %v457, 0
    %v463 = vperm.slane %v461, 0
    %v466 = vadd.f32 %v60, %v462
    %v467 = vadd.f32 %v61, %v463
    %v468 = vtanh.pop %v466
    %v469 = vtanh.pop %v467
    %v470 = vmul.f32 %v468, %v164
    %v471 = vmul.f32 %v469, %v164
    %v472 = vsel %vm106, %v470, 0.0
    %473 = vadd.xlane.f32.xlu0 %v472
    %v474 = vpop.xlane.xlu0 %473
    %v475 = vsel %vm106, %v471, 0.0
    %476 = vadd.xlane.f32.xlu0 %v475
    %v477 = vpop.xlane.xlu0 %476
    %v478 = vadd.f32 %v474, %v178
    %v479 = vadd.f32 %v477, %v178
    %v482 = vperm.slane %v478, %v185
    %v483 = vperm.slane %v479, %v185
    %v484 = vsel %vm99, %v483, %v482
    %v486 = vsel %vm190, %v484, -inf
    %487 = vmax.xlane.f32.xlu0 %v486
    %v488 = vpop.xlane.xlu0 %487
    %v490 = vperm.slane %v488, 0
    %v491 = vperm.slane %v488, 1
    %v494 = vsub.f32 %v478, %v490
    %v495 = vsub.f32 %v479, %v491
    %v496 = vmul.f32 %v494, 1.442695
    %v497 = vpow.pop %v496
    %v498 = vmul.f32 %v495, 1.442695
    %v499 = vpow.pop %v498
    %502 = vset.pattern.permute.xlu0 0
    %503 = vperm.xlu0 %502, %v497
    %v504 = vpop.permute.xlu0 %503
    %505 = vset.pattern.permute.xlu0 0
    %506 = vperm.xlu0 %505, %v499
    %v507 = vpop.permute.xlu0 %506
    %v508 = vperm.slane %v504, %v185
    %v509 = vperm.slane %v507, %v185
    %v510 = vsel %vm99, %v509, %v508
    %v512 = vsel %vm190, %v510, 0.0
    %513 = vadd.xlane.f32.xlu0 %v512
    %v514 = vpop.xlane.xlu0 %513
    %v515 = vrcp.pop %v514
    %v517 = vperm.slane %v515, 0
    %v518 = vperm.slane %v515, 1
    %v521 = vmul.f32 %v497, %v517
    %v522 = vmul.f32 %v499, %v518
    %524 = vset.pattern.permute.xlu0 0
    %525 = vperm.xlu0 %524, %v521
    %v526 = vpop.permute.xlu0 %525
    %529 = vset.pattern.permute.xlu0 0
    %530 = vperm.xlu0 %529, %v522
    %v531 = vpop.permute.xlu0 %530
    %v533 = vmul.f32 %v526, %v56
    %v534 = vmul.f32 %v531, %v57
    %v535 = vsel %vm106, %v533, 0.0
    %v536 = vrot.slane %v535, 4
    %v537 = vadd.f32 %v535, %v536
    %v538 = vrot.slane %v537, 2
    %v539 = vadd.f32 %v537, %v538
    %v540 = vrot.slane %v539, 1
    %v541 = vadd.f32 %v539, %v540
    %v542 = vsel %vm106, %v534, 0.0
    %v543 = vrot.slane %v542, 4
    %v544 = vadd.f32 %v542, %v543
    %v545 = vrot.slane %v544, 2
    %v546 = vadd.f32 %v544, %v545
    %v547 = vrot.slane %v546, 1
    %v548 = vadd.f32 %v546, %v547
    %v551 = vsel %vm99, %v548, %v541
    %552 = vrot.lane.b32.xlu0 %v551, 32
    %v553 = vpop.permute.xlu0 %552
    %v555 = vsel %vm106, %v440, %v553
    %v556 = vpack.c.bf16 %v555, %v555
    %v558 = vsel %vm136, %v556, 0
    %560 = vmatpush.bf16.msra.mxu0 0
    %561 = vmatpush.bf16.msra.mxu0 0
    %562 = vmatpush.bf16.msra.mxu0 0
    %563 = vmatpush.bf16.msra.mxu0 0
    %564 = vmatpush.bf16.msra.mxu0 %v284
    %565 = vmatpush.bf16.msra.mxu0 %v283
    %566 = vmatpush.bf16.msra.mxu0 %v282
    %567 = vmatpush.bf16.msra.mxu0 %v281
    %568 = vmatmul.bf16.gmra.mxu0 %v558
    %v569 = vpop.f32.mrf.mxu0
    %v570 = vadd.f32 %v263, %v569
    %v571 = vpop.f32.mrf.mxu0
    %572 = vdwg.mxu0
    %v573 = vxor.u32 %v570, 2147483648
    %v574 = vmul.f32 %v573, 1.442695
    %v575 = vpow.pop %v574
    %v576 = vadd.f32 %v575, 1.0
    %v577 = vrcp.pop %v576
    %v578 = vmul.f32 %v576, %v577
    %v579 = vsub.f32 1.0, %v578
    %v580 = vmul.f32 %v577, %v579
    %v581 = vadd.f32 %v577, %v580
    %vm582 = vweird.f32 %v576
    %vm583 = vweird.f32 %v577
    %vm584 = vmor %vm582, %vm583
    %v585 = vsel %vm584, %v577, %v581
    %v586 = vand.u32 2147483647, %v576
    %vm587 = vcmp.eq.f32.partialorder %v586, 8.507059e+37
    %v588 = vand.u32 %v576, 2147483648
    %v589 = vor.u32 1.1754944e-38, %v588
    %v590 = vsel %vm587, %v589, %v585
    %v591 = vmul.f32 1.0, %v590
    %v593 = vmul.f32 %v591, %v551
    %v594 = vsel %vm106, %v593, %v421
    %v595 = vpack.c.bf16 %v594, %v594
    %v597 = vsel %vm136, %v595, 0
    %599 = vmatpush.bf16.msra.mxu0 0
    %600 = vmatpush.bf16.msra.mxu0 0
    %601 = vmatpush.bf16.msra.mxu0 0
    %602 = vmatpush.bf16.msra.mxu0 0
    %603 = vmatpush.bf16.msra.mxu0 %v347
    %604 = vmatpush.bf16.msra.mxu0 %v346
    %605 = vmatpush.bf16.msra.mxu0 %v345
    %606 = vmatpush.bf16.msra.mxu0 %v344
    %607 = vmatmul.bf16.gmra.mxu0 %v597
    %v608 = vpop.f32.mrf.mxu0
    %v609 = vadd.f32 0.0, %v608
    %v610 = vpop.f32.mrf.mxu0
    %611 = vdwg.mxu0
    %v612 = vadd.f32 %v609, %v369
    %v613 = vxor.u32 %v612, 2147483648
    %v614 = vmul.f32 %v613, 1.442695
    %v615 = vpow.pop %v614
    %v616 = vadd.f32 %v615, 1.0
    %v617 = vrcp.pop %v616
    %v618 = vmul.f32 %v616, %v617
    %v619 = vsub.f32 1.0, %v618
    %v620 = vmul.f32 %v617, %v619
    %v621 = vadd.f32 %v617, %v620
    %vm622 = vweird.f32 %v616
    %vm623 = vweird.f32 %v617
    %vm624 = vmor %vm622, %vm623
    %v625 = vsel %vm624, %v617, %v621
    %v626 = vand.u32 2147483647, %v616
    %vm627 = vcmp.eq.f32.partialorder %v626, 8.507059e+37
    %v628 = vand.u32 %v616, 2147483648
    %v629 = vor.u32 1.1754944e-38, %v628
    %v630 = vsel %vm627, %v629, %v625
    %v631 = vmul.f32 1.0, %v630
    %v632 = vadd.f32 %v609, %v394
    %v633 = vadd.f32 %v609, %v400
    %635 = vrot.lane.b32.xlu0 %v633, 32
    %v636 = vpop.permute.xlu0 %635
    %v638 = vmul.f32 %v631, %v636
    %640 = vrot.lane.b32.xlu0 %v638, 64
    %v641 = vpop.permute.xlu0 %640
    %v643 = vadd.f32 %v632, %v641
    %v644 = vtanh.pop %v643
    %v645 = vsub.f32 1.0, %v631
    %647 = vrot.lane.b32.xlu0 %v644, 96
    %v648 = vpop.permute.xlu0 %647
    %v650 = vmul.f32 %v645, %v648
    %v651 = vmul.f32 %v631, %v421
    %v652 = vadd.f32 %v650, %v651
    %v654 = vrot.slane %v652, 1
    %v655 = vperm.slane %v652, 0
    %v656 = vperm.slane %v654, 0
    %657 = vrot.lane.b32.xlu0 %v655, 96
    %v658 = vpop.permute.xlu0 %657
    %659 = vrot.lane.b32.xlu0 %v656, 96
    %v660 = vpop.permute.xlu0 %659
    %663 = vst.msk [vmem:[#allocation4 + $0x1] sm:$0x1] %vm432, %v658
    %664 = vst.msk [vmem:[#allocation4 + $0x9] sm:$0x1] %vm432, %v660
    %v665 = vld [vmem:[%s0 + $0x2] sm:$0x1]
    %v666 = vld [vmem:[%s0 + $0xa] sm:$0x1]
    %v669 = vrot.slane %v666, 7
    %v670 = vsel %vm99, %v669, %v665
    %v672 = vsel %vm106, %v670, %v652
    %v673 = vpack.c.bf16 %v672, %v672
    %v675 = vsel %vm136, %v673, 0
    %677 = vmatpush.bf16.msra.mxu0 0
    %678 = vmatpush.bf16.msra.mxu0 0
    %679 = vmatpush.bf16.msra.mxu0 0
    %680 = vmatpush.bf16.msra.mxu0 0
    %681 = vmatpush.bf16.msra.mxu0 %v131
    %682 = vmatpush.bf16.msra.mxu0 %v130
    %683 = vmatpush.bf16.msra.mxu0 %v129
    %684 = vmatpush.bf16.msra.mxu0 %v128
    %685 = vmatmul.bf16.gmra.mxu0 %v675
    %v686 = vpop.f32.mrf.mxu0
    %v687 = vadd.f32 %v110, %v686
    %v688 = vpop.f32.mrf.mxu0
    %689 = vdwg.mxu0
    %v691 = vrot.slane %v687, 1
    %v692 = vperm.slane %v687, 0
    %v693 = vperm.slane %v691, 0
    %v696 = vadd.f32 %v60, %v692
    %v697 = vadd.f32 %v61, %v693
    %v698 = vtanh.pop %v696
    %v699 = vtanh.pop %v697
    %v700 = vmul.f32 %v698, %v164
    %v701 = vmul.f32 %v699, %v164
    %v702 = vsel %vm106, %v700, 0.0
    %703 = vadd.xlane.f32.xlu0 %v702
    %v704 = vpop.xlane.xlu0 %703
    %v705 = vsel %vm106, %v701, 0.0
    %706 = vadd.xlane.f32.xlu0 %v705
    %v707 = vpop.xlane.xlu0 %706
    %v708 = vadd.f32 %v704, %v178
    %v709 = vadd.f32 %v707, %v178
    %v712 = vperm.slane %v708, %v185
    %v713 = vperm.slane %v709, %v185
    %v714 = vsel %vm99, %v713, %v712
    %v716 = vsel %vm190, %v714, -inf
    %717 = vmax.xlane.f32.xlu0 %v716
    %v718 = vpop.xlane.xlu0 %717
    %v720 = vperm.slane %v718, 0
    %v721 = vperm.slane %v718, 1
    %v724 = vsub.f32 %v708, %v720
    %v725 = vsub.f32 %v709, %v721
    %v726 = vmul.f32 %v724, 1.442695
    %v727 = vpow.pop %v726
    %v728 = vmul.f32 %v725, 1.442695
    %v729 = vpow.pop %v728
    %732 = vset.pattern.permute.xlu0 0
    %733 = vperm.xlu0 %732, %v727
    %v734 = vpop.permute.xlu0 %733
    %735 = vset.pattern.permute.xlu0 0
    %736 = vperm.xlu0 %735, %v729
    %v737 = vpop.permute.xlu0 %736
    %v738 = vperm.slane %v734, %v185
    %v739 = vperm.slane %v737, %v185
    %v740 = vsel %vm99, %v739, %v738
    %v742 = vsel %vm190, %v740, 0.0
    %743 = vadd.xlane.f32.xlu0 %v742
    %v744 = vpop.xlane.xlu0 %743
    %v745 = vrcp.pop %v744
    %v747 = vperm.slane %v745, 0
    %v748 = vperm.slane %v745, 1
    %v751 = vmul.f32 %v727, %v747
    %v752 = vmul.f32 %v729, %v748
    %754 = vset.pattern.permute.xlu0 0
    %755 = vperm.xlu0 %754, %v751
    %v756 = vpop.permute.xlu0 %755
    %759 = vset.pattern.permute.xlu0 0
    %760 = vperm.xlu0 %759, %v752
    %v761 = vpop.permute.xlu0 %760
    %v763 = vmul.f32 %v756, %v56
    %v764 = vmul.f32 %v761, %v57
    %v765 = vsel %vm106, %v763, 0.0
    %v766 = vrot.slane %v765, 4
    %v767 = vadd.f32 %v765, %v766
    %v768 = vrot.slane %v767, 2
    %v769 = vadd.f32 %v767, %v768
    %v770 = vrot.slane %v769, 1
    %v771 = vadd.f32 %v769, %v770
    %v772 = vsel %vm106, %v764, 0.0
    %v773 = vrot.slane %v772, 4
    %v774 = vadd.f32 %v772, %v773
    %v775 = vrot.slane %v774, 2
    %v776 = vadd.f32 %v774, %v775
    %v777 = vrot.slane %v776, 1
    %v778 = vadd.f32 %v776, %v777
    %v781 = vsel %vm99, %v778, %v771
    %782 = vrot.lane.b32.xlu0 %v781, 32
    %v783 = vpop.permute.xlu0 %782
    %v785 = vsel %vm106, %v670, %v783
    %v786 = vpack.c.bf16 %v785, %v785
    %v788 = vsel %vm136, %v786, 0
    %790 = vmatpush.bf16.msra.mxu0 0
    %791 = vmatpush.bf16.msra.mxu0 0
    %792 = vmatpush.bf16.msra.mxu0 0
    %793 = vmatpush.bf16.msra.mxu0 0
    %794 = vmatpush.bf16.msra.mxu0 %v284
    %795 = vmatpush.bf16.msra.mxu0 %v283
    %796 = vmatpush.bf16.msra.mxu0 %v282
    %797 = vmatpush.bf16.msra.mxu0 %v281
    %798 = vmatmul.bf16.gmra.mxu0 %v788
    %v799 = vpop.f32.mrf.mxu0
    %v800 = vadd.f32 %v263, %v799
    %v801 = vpop.f32.mrf.mxu0
    %802 = vdwg.mxu0
    %v803 = vxor.u32 %v800, 2147483648
    %v804 = vmul.f32 %v803, 1.442695
    %v805 = vpow.pop %v804
    %v806 = vadd.f32 %v805, 1.0
    %v807 = vrcp.pop %v806
    %v808 = vmul.f32 %v806, %v807
    %v809 = vsub.f32 1.0, %v808
    %v810 = vmul.f32 %v807, %v809
    %v811 = vadd.f32 %v807, %v810
    %vm812 = vweird.f32 %v806
    %vm813 = vweird.f32 %v807
    %vm814 = vmor %vm812, %vm813
    %v815 = vsel %vm814, %v807, %v811
    %v816 = vand.u32 2147483647, %v806
    %vm817 = vcmp.eq.f32.partialorder %v816, 8.507059e+37
    %v818 = vand.u32 %v806, 2147483648
    %v819 = vor.u32 1.1754944e-38, %v818
    %v820 = vsel %vm817, %v819, %v815
    %v821 = vmul.f32 1.0, %v820
    %v823 = vmul.f32 %v821, %v781
    %v824 = vsel %vm106, %v823, %v652
    %v825 = vpack.c.bf16 %v824, %v824
    %v827 = vsel %vm136, %v825, 0
    %829 = vmatpush.bf16.msra.mxu0 0
    %830 = vmatpush.bf16.msra.mxu0 0
    %831 = vmatpush.bf16.msra.mxu0 0
    %832 = vmatpush.bf16.msra.mxu0 0
    %833 = vmatpush.bf16.msra.mxu0 %v347
    %834 = vmatpush.bf16.msra.mxu0 %v346
    %835 = vmatpush.bf16.msra.mxu0 %v345
    %836 = vmatpush.bf16.msra.mxu0 %v344
    %837 = vmatmul.bf16.gmra.mxu0 %v827
    %v838 = vpop.f32.mrf.mxu0
    %v839 = vadd.f32 0.0, %v838
    %v840 = vpop.f32.mrf.mxu0
    %841 = vdwg.mxu0
    %v842 = vadd.f32 %v839, %v369
    %v843 = vxor.u32 %v842, 2147483648
    %v844 = vmul.f32 %v843, 1.442695
    %v845 = vpow.pop %v844
    %v846 = vadd.f32 %v845, 1.0
    %v847 = vrcp.pop %v846
    %v848 = vmul.f32 %v846, %v847
    %v849 = vsub.f32 1.0, %v848
    %v850 = vmul.f32 %v847, %v849
    %v851 = vadd.f32 %v847, %v850
    %vm852 = vweird.f32 %v846
    %vm853 = vweird.f32 %v847
    %vm854 = vmor %vm852, %vm853
    %v855 = vsel %vm854, %v847, %v851
    %v856 = vand.u32 2147483647, %v846
    %vm857 = vcmp.eq.f32.partialorder %v856, 8.507059e+37
    %v858 = vand.u32 %v846, 2147483648
    %v859 = vor.u32 1.1754944e-38, %v858
    %v860 = vsel %vm857, %v859, %v855
    %v861 = vmul.f32 1.0, %v860
    %v862 = vadd.f32 %v839, %v394
    %v863 = vadd.f32 %v839, %v400
    %865 = vrot.lane.b32.xlu0 %v863, 32
    %v866 = vpop.permute.xlu0 %865
    %v868 = vmul.f32 %v861, %v866
    %870 = vrot.lane.b32.xlu0 %v868, 64
    %v871 = vpop.permute.xlu0 %870
    %v873 = vadd.f32 %v862, %v871
    %v874 = vtanh.pop %v873
    %v875 = vsub.f32 1.0, %v861
    %877 = vrot.lane.b32.xlu0 %v874, 96
    %v878 = vpop.permute.xlu0 %877
    %v880 = vmul.f32 %v875, %v878
    %v881 = vmul.f32 %v861, %v652
    %v882 = vadd.f32 %v880, %v881
    %v884 = vrot.slane %v882, 1
    %v885 = vperm.slane %v882, 0
    %v886 = vperm.slane %v884, 0
    %887 = vrot.lane.b32.xlu0 %v885, 96
    %v888 = vpop.permute.xlu0 %887
    %889 = vrot.lane.b32.xlu0 %v886, 96
    %v890 = vpop.permute.xlu0 %889
    %893 = vst.msk [vmem:[#allocation4 + $0x2] sm:$0x1] %vm432, %v888
    %894 = vst.msk [vmem:[#allocation4 + $0xa] sm:$0x1] %vm432, %v890
    %v895 = vld [vmem:[%s0 + $0x3] sm:$0x1]
    %v896 = vld [vmem:[%s0 + $0xb] sm:$0x1]
    %v899 = vrot.slane %v896, 7
    %v900 = vsel %vm99, %v899, %v895
    %v902 = vsel %vm106, %v900, %v882
    %v903 = vpack.c.bf16 %v902, %v902
    %v905 = vsel %vm136, %v903, 0
    %907 = vmatpush.bf16.msra.mxu0 0
    %908 = vmatpush.bf16.msra.mxu0 0
    %909 = vmatpush.bf16.msra.mxu0 0
    %910 = vmatpush.bf16.msra.mxu0 0
    %911 = vmatpush.bf16.msra.mxu0 %v131
    %912 = vmatpush.bf16.msra.mxu0 %v130
    %913 = vmatpush.bf16.msra.mxu0 %v129
    %914 = vmatpush.bf16.msra.mxu0 %v128
    %915 = vmatmul.bf16.gmra.mxu0 %v905
    %v916 = vpop.f32.mrf.mxu0
    %v917 = vadd.f32 %v110, %v916
    %v918 = vpop.f32.mrf.mxu0
    %919 = vdwg.mxu0
    %v921 = vrot.slane %v917, 1
    %v922 = vperm.slane %v917, 0
    %v923 = vperm.slane %v921, 0
    %v926 = vadd.f32 %v60, %v922
    %v927 = vadd.f32 %v61, %v923
    %v928 = vtanh.pop %v926
    %v929 = vtanh.pop %v927
    %v930 = vmul.f32 %v928, %v164
    %v931 = vmul.f32 %v929, %v164
    %v932 = vsel %vm106, %v930, 0.0
    %933 = vadd.xlane.f32.xlu0 %v932
    %v934 = vpop.xlane.xlu0 %933
    %v935 = vsel %vm106, %v931, 0.0
    %936 = vadd.xlane.f32.xlu0 %v935
    %v937 = vpop.xlane.xlu0 %936
    %v938 = vadd.f32 %v934, %v178
    %v939 = vadd.f32 %v937, %v178
    %v942 = vperm.slane %v938, %v185
    %v943 = vperm.slane %v939, %v185
    %v944 = vsel %vm99, %v943, %v942
    %v946 = vsel %vm190, %v944, -inf
    %947 = vmax.xlane.f32.xlu0 %v946
    %v948 = vpop.xlane.xlu0 %947
    %v950 = vperm.slane %v948, 0
    %v951 = vperm.slane %v948, 1
    %v954 = vsub.f32 %v938, %v950
    %v955 = vsub.f32 %v939, %v951
    %v956 = vmul.f32 %v954, 1.442695
    %v957 = vpow.pop %v956
    %v958 = vmul.f32 %v955, 1.442695
    %v959 = vpow.pop %v958
    %962 = vset.pattern.permute.xlu0 0
    %963 = vperm.xlu0 %962, %v957
    %v964 = vpop.permute.xlu0 %963
    %965 = vset.pattern.permute.xlu0 0
    %966 = vperm.xlu0 %965, %v959
    %v967 = vpop.permute.xlu0 %966
    %v968 = vperm.slane %v964, %v185
    %v969 = vperm.slane %v967, %v185
    %v970 = vsel %vm99, %v969, %v968
    %v972 = vsel %vm190, %v970, 0.0
    %973 = vadd.xlane.f32.xlu0 %v972
    %v974 = vpop.xlane.xlu0 %973
    %v975 = vrcp.pop %v974
    %v977 = vperm.slane %v975, 0
    %v978 = vperm.slane %v975, 1
    %v981 = vmul.f32 %v957, %v977
    %v982 = vmul.f32 %v959, %v978
    %984 = vset.pattern.permute.xlu0 0
    %985 = vperm.xlu0 %984, %v981
    %v986 = vpop.permute.xlu0 %985
    %989 = vset.pattern.permute.xlu0 0
    %990 = vperm.xlu0 %989, %v982
    %v991 = vpop.permute.xlu0 %990
    %v993 = vmul.f32 %v986, %v56
    %v994 = vmul.f32 %v991, %v57
    %v995 = vsel %vm106, %v993, 0.0
    %v996 = vrot.slane %v995, 4
    %v997 = vadd.f32 %v995, %v996
    %v998 = vrot.slane %v997, 2
    %v999 = vadd.f32 %v997, %v998
    %v1000 = vrot.slane %v999, 1
    %v1001 = vadd.f32 %v999, %v1000
    %v1002 = vsel %vm106, %v994, 0.0
    %v1003 = vrot.slane %v1002, 4
    %v1004 = vadd.f32 %v1002, %v1003
    %v1005 = vrot.slane %v1004, 2
    %v1006 = vadd.f32 %v1004, %v1005
    %v1007 = vrot.slane %v1006, 1
    %v1008 = vadd.f32 %v1006, %v1007
    %v1011 = vsel %vm99, %v1008, %v1001
    %1012 = vrot.lane.b32.xlu0 %v1011, 32
    %v1013 = vpop.permute.xlu0 %1012
    %v1015 = vsel %vm106, %v900, %v1013
    %v1016 = vpack.c.bf16 %v1015, %v1015
    %v1018 = vsel %vm136, %v1016, 0
    %1020 = vmatpush.bf16.msra.mxu0 0
    %1021 = vmatpush.bf16.msra.mxu0 0
    %1022 = vmatpush.bf16.msra.mxu0 0
    %1023 = vmatpush.bf16.msra.mxu0 0
    %1024 = vmatpush.bf16.msra.mxu0 %v284
    %1025 = vmatpush.bf16.msra.mxu0 %v283
    %1026 = vmatpush.bf16.msra.mxu0 %v282
    %1027 = vmatpush.bf16.msra.mxu0 %v281
    %1028 = vmatmul.bf16.gmra.mxu0 %v1018
    %v1029 = vpop.f32.mrf.mxu0
    %v1030 = vadd.f32 %v263, %v1029
    %v1031 = vpop.f32.mrf.mxu0
    %1032 = vdwg.mxu0
    %v1033 = vxor.u32 %v1030, 2147483648
    %v1034 = vmul.f32 %v1033, 1.442695
    %v1035 = vpow.pop %v1034
    %v1036 = vadd.f32 %v1035, 1.0
    %v1037 = vrcp.pop %v1036
    %v1038 = vmul.f32 %v1036, %v1037
    %v1039 = vsub.f32 1.0, %v1038
    %v1040 = vmul.f32 %v1037, %v1039
    %v1041 = vadd.f32 %v1037, %v1040
    %vm1042 = vweird.f32 %v1036
    %vm1043 = vweird.f32 %v1037
    %vm1044 = vmor %vm1042, %vm1043
    %v1045 = vsel %vm1044, %v1037, %v1041
    %v1046 = vand.u32 2147483647, %v1036
    %vm1047 = vcmp.eq.f32.partialorder %v1046, 8.507059e+37
    %v1048 = vand.u32 %v1036, 2147483648
    %v1049 = vor.u32 1.1754944e-38, %v1048
    %v1050 = vsel %vm1047, %v1049, %v1045
    %v1051 = vmul.f32 1.0, %v1050
    %v1053 = vmul.f32 %v1051, %v1011
    %v1054 = vsel %vm106, %v1053, %v882
    %v1055 = vpack.c.bf16 %v1054, %v1054
    %v1057 = vsel %vm136, %v1055, 0
    %1059 = vmatpush.bf16.msra.mxu0 0
    %1060 = vmatpush.bf16.msra.mxu0 0
    %1061 = vmatpush.bf16.msra.mxu0 0
    %1062 = vmatpush.bf16.msra.mxu0 0
    %1063 = vmatpush.bf16.msra.mxu0 %v347
    %1064 = vmatpush.bf16.msra.mxu0 %v346
    %1065 = vmatpush.bf16.msra.mxu0 %v345
    %1066 = vmatpush.bf16.msra.mxu0 %v344
    %1067 = vmatmul.bf16.gmra.mxu0 %v1057
    %v1068 = vpop.f32.mrf.mxu0
    %v1069 = vadd.f32 0.0, %v1068
    %v1070 = vpop.f32.mrf.mxu0
    %1071 = vdwg.mxu0
    %v1072 = vadd.f32 %v1069, %v369
    %v1073 = vxor.u32 %v1072, 2147483648
    %v1074 = vmul.f32 %v1073, 1.442695
    %v1075 = vpow.pop %v1074
    %v1076 = vadd.f32 %v1075, 1.0
    %v1077 = vrcp.pop %v1076
    %v1078 = vmul.f32 %v1076, %v1077
    %v1079 = vsub.f32 1.0, %v1078
    %v1080 = vmul.f32 %v1077, %v1079
    %v1081 = vadd.f32 %v1077, %v1080
    %vm1082 = vweird.f32 %v1076
    %vm1083 = vweird.f32 %v1077
    %vm1084 = vmor %vm1082, %vm1083
    %v1085 = vsel %vm1084, %v1077, %v1081
    %v1086 = vand.u32 2147483647, %v1076
    %vm1087 = vcmp.eq.f32.partialorder %v1086, 8.507059e+37
    %v1088 = vand.u32 %v1076, 2147483648
    %v1089 = vor.u32 1.1754944e-38, %v1088
    %v1090 = vsel %vm1087, %v1089, %v1085
    %v1091 = vmul.f32 1.0, %v1090
    %v1092 = vadd.f32 %v1069, %v394
    %v1093 = vadd.f32 %v1069, %v400
    %1095 = vrot.lane.b32.xlu0 %v1093, 32
    %v1096 = vpop.permute.xlu0 %1095
    %v1098 = vmul.f32 %v1091, %v1096
    %1100 = vrot.lane.b32.xlu0 %v1098, 64
    %v1101 = vpop.permute.xlu0 %1100
    %v1103 = vadd.f32 %v1092, %v1101
    %v1104 = vtanh.pop %v1103
    %v1105 = vsub.f32 1.0, %v1091
    %1107 = vrot.lane.b32.xlu0 %v1104, 96
    %v1108 = vpop.permute.xlu0 %1107
    %v1110 = vmul.f32 %v1105, %v1108
    %v1111 = vmul.f32 %v1091, %v882
    %v1112 = vadd.f32 %v1110, %v1111
    %v1114 = vrot.slane %v1112, 1
    %v1115 = vperm.slane %v1112, 0
    %v1116 = vperm.slane %v1114, 0
    %1117 = vrot.lane.b32.xlu0 %v1115, 96
    %v1118 = vpop.permute.xlu0 %1117
    %1119 = vrot.lane.b32.xlu0 %v1116, 96
    %v1120 = vpop.permute.xlu0 %1119
    %1123 = vst.msk [vmem:[#allocation4 + $0x3] sm:$0x1] %vm432, %v1118
    %1124 = vst.msk [vmem:[#allocation4 + $0xb] sm:$0x1] %vm432, %v1120
    %v1125 = vld [vmem:[%s0 + $0x4] sm:$0x1]
    %v1126 = vld [vmem:[%s0 + $0xc] sm:$0x1]
    %v1129 = vrot.slane %v1126, 7
    %v1130 = vsel %vm99, %v1129, %v1125
    %v1132 = vsel %vm106, %v1130, %v1112
    %v1133 = vpack.c.bf16 %v1132, %v1132
    %v1135 = vsel %vm136, %v1133, 0
    %1137 = vmatpush.bf16.msra.mxu0 0
    %1138 = vmatpush.bf16.msra.mxu0 0
    %1139 = vmatpush.bf16.msra.mxu0 0
    %1140 = vmatpush.bf16.msra.mxu0 0
    %1141 = vmatpush.bf16.msra.mxu0 %v131
    %1142 = vmatpush.bf16.msra.mxu0 %v130
    %1143 = vmatpush.bf16.msra.mxu0 %v129
    %1144 = vmatpush.bf16.msra.mxu0 %v128
    %1145 = vmatmul.bf16.gmra.mxu0 %v1135
    %v1146 = vpop.f32.mrf.mxu0
    %v1147 = vadd.f32 %v110, %v1146
    %v1148 = vpop.f32.mrf.mxu0
    %1149 = vdwg.mxu0
    %v1151 = vrot.slane %v1147, 1
    %v1152 = vperm.slane %v1147, 0
    %v1153 = vperm.slane %v1151, 0
    %v1156 = vadd.f32 %v60, %v1152
    %v1157 = vadd.f32 %v61, %v1153
    %v1158 = vtanh.pop %v1156
    %v1159 = vtanh.pop %v1157
    %v1160 = vmul.f32 %v1158, %v164
    %v1161 = vmul.f32 %v1159, %v164
    %v1162 = vsel %vm106, %v1160, 0.0
    %1163 = vadd.xlane.f32.xlu0 %v1162
    %v1164 = vpop.xlane.xlu0 %1163
    %v1165 = vsel %vm106, %v1161, 0.0
    %1166 = vadd.xlane.f32.xlu0 %v1165
    %v1167 = vpop.xlane.xlu0 %1166
    %v1168 = vadd.f32 %v1164, %v178
    %v1169 = vadd.f32 %v1167, %v178
    %v1172 = vperm.slane %v1168, %v185
    %v1173 = vperm.slane %v1169, %v185
    %v1174 = vsel %vm99, %v1173, %v1172
    %v1176 = vsel %vm190, %v1174, -inf
    %1177 = vmax.xlane.f32.xlu0 %v1176
    %v1178 = vpop.xlane.xlu0 %1177
    %v1180 = vperm.slane %v1178, 0
    %v1181 = vperm.slane %v1178, 1
    %v1184 = vsub.f32 %v1168, %v1180
    %v1185 = vsub.f32 %v1169, %v1181
    %v1186 = vmul.f32 %v1184, 1.442695
    %v1187 = vpow.pop %v1186
    %v1188 = vmul.f32 %v1185, 1.442695
    %v1189 = vpow.pop %v1188
    %1192 = vset.pattern.permute.xlu0 0
    %1193 = vperm.xlu0 %1192, %v1187
    %v1194 = vpop.permute.xlu0 %1193
    %1195 = vset.pattern.permute.xlu0 0
    %1196 = vperm.xlu0 %1195, %v1189
    %v1197 = vpop.permute.xlu0 %1196
    %v1198 = vperm.slane %v1194, %v185
    %v1199 = vperm.slane %v1197, %v185
    %v1200 = vsel %vm99, %v1199, %v1198
    %v1202 = vsel %vm190, %v1200, 0.0
    %1203 = vadd.xlane.f32.xlu0 %v1202
    %v1204 = vpop.xlane.xlu0 %1203
    %v1205 = vrcp.pop %v1204
    %v1207 = vperm.slane %v1205, 0
    %v1208 = vperm.slane %v1205, 1
    %v1211 = vmul.f32 %v1187, %v1207
    %v1212 = vmul.f32 %v1189, %v1208
    %1214 = vset.pattern.permute.xlu0 0
    %1215 = vperm.xlu0 %1214, %v1211
    %v1216 = vpop.permute.xlu0 %1215
    %1219 = vset.pattern.permute.xlu0 0
    %1220 = vperm.xlu0 %1219, %v1212
    %v1221 = vpop.permute.xlu0 %1220
    %v1223 = vmul.f32 %v1216, %v56
    %v1224 = vmul.f32 %v1221, %v57
    %v1225 = vsel %vm106, %v1223, 0.0
    %v1226 = vrot.slane %v1225, 4
    %v1227 = vadd.f32 %v1225, %v1226
    %v1228 = vrot.slane %v1227, 2
    %v1229 = vadd.f32 %v1227, %v1228
    %v1230 = vrot.slane %v1229, 1
    %v1231 = vadd.f32 %v1229, %v1230
    %v1232 = vsel %vm106, %v1224, 0.0
    %v1233 = vrot.slane %v1232, 4
    %v1234 = vadd.f32 %v1232, %v1233
    %v1235 = vrot.slane %v1234, 2
    %v1236 = vadd.f32 %v1234, %v1235
    %v1237 = vrot.slane %v1236, 1
    %v1238 = vadd.f32 %v1236, %v1237
    %v1241 = vsel %vm99, %v1238, %v1231
    %1242 = vrot.lane.b32.xlu0 %v1241, 32
    %v1243 = vpop.permute.xlu0 %1242
    %v1245 = vsel %vm106, %v1130, %v1243
    %v1246 = vpack.c.bf16 %v1245, %v1245
    %v1248 = vsel %vm136, %v1246, 0
    %1250 = vmatpush.bf16.msra.mxu0 0
    %1251 = vmatpush.bf16.msra.mxu0 0
    %1252 = vmatpush.bf16.msra.mxu0 0
    %1253 = vmatpush.bf16.msra.mxu0 0
    %1254 = vmatpush.bf16.msra.mxu0 %v284
    %1255 = vmatpush.bf16.msra.mxu0 %v283
    %1256 = vmatpush.bf16.msra.mxu0 %v282
    %1257 = vmatpush.bf16.msra.mxu0 %v281
    %1258 = vmatmul.bf16.gmra.mxu0 %v1248
    %v1259 = vpop.f32.mrf.mxu0
    %v1260 = vadd.f32 %v263, %v1259
    %v1261 = vpop.f32.mrf.mxu0
    %1262 = vdwg.mxu0
    %v1263 = vxor.u32 %v1260, 2147483648
    %v1264 = vmul.f32 %v1263, 1.442695
    %v1265 = vpow.pop %v1264
    %v1266 = vadd.f32 %v1265, 1.0
    %v1267 = vrcp.pop %v1266
    %v1268 = vmul.f32 %v1266, %v1267
    %v1269 = vsub.f32 1.0, %v1268
    %v1270 = vmul.f32 %v1267, %v1269
    %v1271 = vadd.f32 %v1267, %v1270
    %vm1272 = vweird.f32 %v1266
    %vm1273 = vweird.f32 %v1267
    %vm1274 = vmor %vm1272, %vm1273
    %v1275 = vsel %vm1274, %v1267, %v1271
    %v1276 = vand.u32 2147483647, %v1266
    %vm1277 = vcmp.eq.f32.partialorder %v1276, 8.507059e+37
    %v1278 = vand.u32 %v1266, 2147483648
    %v1279 = vor.u32 1.1754944e-38, %v1278
    %v1280 = vsel %vm1277, %v1279, %v1275
    %v1281 = vmul.f32 1.0, %v1280
    %v1283 = vmul.f32 %v1281, %v1241
    %v1284 = vsel %vm106, %v1283, %v1112
    %v1285 = vpack.c.bf16 %v1284, %v1284
    %v1287 = vsel %vm136, %v1285, 0
    %1289 = vmatpush.bf16.msra.mxu0 0
    %1290 = vmatpush.bf16.msra.mxu0 0
    %1291 = vmatpush.bf16.msra.mxu0 0
    %1292 = vmatpush.bf16.msra.mxu0 0
    %1293 = vmatpush.bf16.msra.mxu0 %v347
    %1294 = vmatpush.bf16.msra.mxu0 %v346
    %1295 = vmatpush.bf16.msra.mxu0 %v345
    %1296 = vmatpush.bf16.msra.mxu0 %v344
    %1297 = vmatmul.bf16.gmra.mxu0 %v1287
    %v1298 = vpop.f32.mrf.mxu0
    %v1299 = vadd.f32 0.0, %v1298
    %v1300 = vpop.f32.mrf.mxu0
    %1301 = vdwg.mxu0
    %v1302 = vadd.f32 %v1299, %v369
    %v1303 = vxor.u32 %v1302, 2147483648
    %v1304 = vmul.f32 %v1303, 1.442695
    %v1305 = vpow.pop %v1304
    %v1306 = vadd.f32 %v1305, 1.0
    %v1307 = vrcp.pop %v1306
    %v1308 = vmul.f32 %v1306, %v1307
    %v1309 = vsub.f32 1.0, %v1308
    %v1310 = vmul.f32 %v1307, %v1309
    %v1311 = vadd.f32 %v1307, %v1310
    %vm1312 = vweird.f32 %v1306
    %vm1313 = vweird.f32 %v1307
    %vm1314 = vmor %vm1312, %vm1313
    %v1315 = vsel %vm1314, %v1307, %v1311
    %v1316 = vand.u32 2147483647, %v1306
    %vm1317 = vcmp.eq.f32.partialorder %v1316, 8.507059e+37
    %v1318 = vand.u32 %v1306, 2147483648
    %v1319 = vor.u32 1.1754944e-38, %v1318
    %v1320 = vsel %vm1317, %v1319, %v1315
    %v1321 = vmul.f32 1.0, %v1320
    %v1322 = vadd.f32 %v1299, %v394
    %v1323 = vadd.f32 %v1299, %v400
    %1325 = vrot.lane.b32.xlu0 %v1323, 32
    %v1326 = vpop.permute.xlu0 %1325
    %v1328 = vmul.f32 %v1321, %v1326
    %1330 = vrot.lane.b32.xlu0 %v1328, 64
    %v1331 = vpop.permute.xlu0 %1330
    %v1333 = vadd.f32 %v1322, %v1331
    %v1334 = vtanh.pop %v1333
    %v1335 = vsub.f32 1.0, %v1321
    %1337 = vrot.lane.b32.xlu0 %v1334, 96
    %v1338 = vpop.permute.xlu0 %1337
    %v1340 = vmul.f32 %v1335, %v1338
    %v1341 = vmul.f32 %v1321, %v1112
    %v1342 = vadd.f32 %v1340, %v1341
    %v1344 = vrot.slane %v1342, 1
    %v1345 = vperm.slane %v1342, 0
    %v1346 = vperm.slane %v1344, 0
    %1347 = vrot.lane.b32.xlu0 %v1345, 96
    %v1348 = vpop.permute.xlu0 %1347
    %1349 = vrot.lane.b32.xlu0 %v1346, 96
    %v1350 = vpop.permute.xlu0 %1349
    %1353 = vst.msk [vmem:[#allocation4 + $0x4] sm:$0x1] %vm432, %v1348
    %1354 = vst.msk [vmem:[#allocation4 + $0xc] sm:$0x1] %vm432, %v1350
    %v1355 = vld [vmem:[%s0 + $0x5] sm:$0x1]
    %v1356 = vld [vmem:[%s0 + $0xd] sm:$0x1]
    %v1359 = vrot.slane %v1356, 7
    %v1360 = vsel %vm99, %v1359, %v1355
    %v1362 = vsel %vm106, %v1360, %v1342
    %v1363 = vpack.c.bf16 %v1362, %v1362
    %v1365 = vsel %vm136, %v1363, 0
    %1367 = vmatpush.bf16.msra.mxu0 0
    %1368 = vmatpush.bf16.msra.mxu0 0
    %1369 = vmatpush.bf16.msra.mxu0 0
    %1370 = vmatpush.bf16.msra.mxu0 0
    %1371 = vmatpush.bf16.msra.mxu0 %v131
    %1372 = vmatpush.bf16.msra.mxu0 %v130
    %1373 = vmatpush.bf16.msra.mxu0 %v129
    %1374 = vmatpush.bf16.msra.mxu0 %v128
    %1375 = vmatmul.bf16.gmra.mxu0 %v1365
    %v1376 = vpop.f32.mrf.mxu0
    %v1377 = vadd.f32 %v110, %v1376
    %v1378 = vpop.f32.mrf.mxu0
    %1379 = vdwg.mxu0
    %v1381 = vrot.slane %v1377, 1
    %v1382 = vperm.slane %v1377, 0
    %v1383 = vperm.slane %v1381, 0
    %v1386 = vadd.f32 %v60, %v1382
    %v1387 = vadd.f32 %v61, %v1383
    %v1388 = vtanh.pop %v1386
    %v1389 = vtanh.pop %v1387
    %v1390 = vmul.f32 %v1388, %v164
    %v1391 = vmul.f32 %v1389, %v164
    %v1392 = vsel %vm106, %v1390, 0.0
    %1393 = vadd.xlane.f32.xlu0 %v1392
    %v1394 = vpop.xlane.xlu0 %1393
    %v1395 = vsel %vm106, %v1391, 0.0
    %1396 = vadd.xlane.f32.xlu0 %v1395
    %v1397 = vpop.xlane.xlu0 %1396
    %v1398 = vadd.f32 %v1394, %v178
    %v1399 = vadd.f32 %v1397, %v178
    %v1402 = vperm.slane %v1398, %v185
    %v1403 = vperm.slane %v1399, %v185
    %v1404 = vsel %vm99, %v1403, %v1402
    %v1406 = vsel %vm190, %v1404, -inf
    %1407 = vmax.xlane.f32.xlu0 %v1406
    %v1408 = vpop.xlane.xlu0 %1407
    %v1410 = vperm.slane %v1408, 0
    %v1411 = vperm.slane %v1408, 1
    %v1414 = vsub.f32 %v1398, %v1410
    %v1415 = vsub.f32 %v1399, %v1411
    %v1416 = vmul.f32 %v1414, 1.442695
    %v1417 = vpow.pop %v1416
    %v1418 = vmul.f32 %v1415, 1.442695
    %v1419 = vpow.pop %v1418
    %1422 = vset.pattern.permute.xlu0 0
    %1423 = vperm.xlu0 %1422, %v1417
    %v1424 = vpop.permute.xlu0 %1423
    %1425 = vset.pattern.permute.xlu0 0
    %1426 = vperm.xlu0 %1425, %v1419
    %v1427 = vpop.permute.xlu0 %1426
    %v1428 = vperm.slane %v1424, %v185
    %v1429 = vperm.slane %v1427, %v185
    %v1430 = vsel %vm99, %v1429, %v1428
    %v1432 = vsel %vm190, %v1430, 0.0
    %1433 = vadd.xlane.f32.xlu0 %v1432
    %v1434 = vpop.xlane.xlu0 %1433
    %v1435 = vrcp.pop %v1434
    %v1437 = vperm.slane %v1435, 0
    %v1438 = vperm.slane %v1435, 1
    %v1441 = vmul.f32 %v1417, %v1437
    %v1442 = vmul.f32 %v1419, %v1438
    %1444 = vset.pattern.permute.xlu0 0
    %1445 = vperm.xlu0 %1444, %v1441
    %v1446 = vpop.permute.xlu0 %1445
    %1449 = vset.pattern.permute.xlu0 0
    %1450 = vperm.xlu0 %1449, %v1442
    %v1451 = vpop.permute.xlu0 %1450
    %v1453 = vmul.f32 %v1446, %v56
    %v1454 = vmul.f32 %v1451, %v57
    %v1455 = vsel %vm106, %v1453, 0.0
    %v1456 = vrot.slane %v1455, 4
    %v1457 = vadd.f32 %v1455, %v1456
    %v1458 = vrot.slane %v1457, 2
    %v1459 = vadd.f32 %v1457, %v1458
    %v1460 = vrot.slane %v1459, 1
    %v1461 = vadd.f32 %v1459, %v1460
    %v1462 = vsel %vm106, %v1454, 0.0
    %v1463 = vrot.slane %v1462, 4
    %v1464 = vadd.f32 %v1462, %v1463
    %v1465 = vrot.slane %v1464, 2
    %v1466 = vadd.f32 %v1464, %v1465
    %v1467 = vrot.slane %v1466, 1
    %v1468 = vadd.f32 %v1466, %v1467
    %v1471 = vsel %vm99, %v1468, %v1461
    %1472 = vrot.lane.b32.xlu0 %v1471, 32
    %v1473 = vpop.permute.xlu0 %1472
    %v1475 = vsel %vm106, %v1360, %v1473
    %v1476 = vpack.c.bf16 %v1475, %v1475
    %v1478 = vsel %vm136, %v1476, 0
    %1480 = vmatpush.bf16.msra.mxu0 0
    %1481 = vmatpush.bf16.msra.mxu0 0
    %1482 = vmatpush.bf16.msra.mxu0 0
    %1483 = vmatpush.bf16.msra.mxu0 0
    %1484 = vmatpush.bf16.msra.mxu0 %v284
    %1485 = vmatpush.bf16.msra.mxu0 %v283
    %1486 = vmatpush.bf16.msra.mxu0 %v282
    %1487 = vmatpush.bf16.msra.mxu0 %v281
    %1488 = vmatmul.bf16.gmra.mxu0 %v1478
    %v1489 = vpop.f32.mrf.mxu0
    %v1490 = vadd.f32 %v263, %v1489
    %v1491 = vpop.f32.mrf.mxu0
    %1492 = vdwg.mxu0
    %v1493 = vxor.u32 %v1490, 2147483648
    %v1494 = vmul.f32 %v1493, 1.442695
    %v1495 = vpow.pop %v1494
    %v1496 = vadd.f32 %v1495, 1.0
    %v1497 = vrcp.pop %v1496
    %v1498 = vmul.f32 %v1496, %v1497
    %v1499 = vsub.f32 1.0, %v1498
    %v1500 = vmul.f32 %v1497, %v1499
    %v1501 = vadd.f32 %v1497, %v1500
    %vm1502 = vweird.f32 %v1496
    %vm1503 = vweird.f32 %v1497
    %vm1504 = vmor %vm1502, %vm1503
    %v1505 = vsel %vm1504, %v1497, %v1501
    %v1506 = vand.u32 2147483647, %v1496
    %vm1507 = vcmp.eq.f32.partialorder %v1506, 8.507059e+37
    %v1508 = vand.u32 %v1496, 2147483648
    %v1509 = vor.u32 1.1754944e-38, %v1508
    %v1510 = vsel %vm1507, %v1509, %v1505
    %v1511 = vmul.f32 1.0, %v1510
    %v1513 = vmul.f32 %v1511, %v1471
    %v1514 = vsel %vm106, %v1513, %v1342
    %v1515 = vpack.c.bf16 %v1514, %v1514
    %v1517 = vsel %vm136, %v1515, 0
    %1519 = vmatpush.bf16.msra.mxu0 0
    %1520 = vmatpush.bf16.msra.mxu0 0
    %1521 = vmatpush.bf16.msra.mxu0 0
    %1522 = vmatpush.bf16.msra.mxu0 0
    %1523 = vmatpush.bf16.msra.mxu0 %v347
    %1524 = vmatpush.bf16.msra.mxu0 %v346
    %1525 = vmatpush.bf16.msra.mxu0 %v345
    %1526 = vmatpush.bf16.msra.mxu0 %v344
    %1527 = vmatmul.bf16.gmra.mxu0 %v1517
    %v1528 = vpop.f32.mrf.mxu0
    %v1529 = vadd.f32 0.0, %v1528
    %v1530 = vpop.f32.mrf.mxu0
    %1531 = vdwg.mxu0
    %v1532 = vadd.f32 %v1529, %v369
    %v1533 = vxor.u32 %v1532, 2147483648
    %v1534 = vmul.f32 %v1533, 1.442695
    %v1535 = vpow.pop %v1534
    %v1536 = vadd.f32 %v1535, 1.0
    %v1537 = vrcp.pop %v1536
    %v1538 = vmul.f32 %v1536, %v1537
    %v1539 = vsub.f32 1.0, %v1538
    %v1540 = vmul.f32 %v1537, %v1539
    %v1541 = vadd.f32 %v1537, %v1540
    %vm1542 = vweird.f32 %v1536
    %vm1543 = vweird.f32 %v1537
    %vm1544 = vmor %vm1542, %vm1543
    %v1545 = vsel %vm1544, %v1537, %v1541
    %v1546 = vand.u32 2147483647, %v1536
    %vm1547 = vcmp.eq.f32.partialorder %v1546, 8.507059e+37
    %v1548 = vand.u32 %v1536, 2147483648
    %v1549 = vor.u32 1.1754944e-38, %v1548
    %v1550 = vsel %vm1547, %v1549, %v1545
    %v1551 = vmul.f32 1.0, %v1550
    %v1552 = vadd.f32 %v1529, %v394
    %v1553 = vadd.f32 %v1529, %v400
    %1555 = vrot.lane.b32.xlu0 %v1553, 32
    %v1556 = vpop.permute.xlu0 %1555
    %v1558 = vmul.f32 %v1551, %v1556
    %1560 = vrot.lane.b32.xlu0 %v1558, 64
    %v1561 = vpop.permute.xlu0 %1560
    %v1563 = vadd.f32 %v1552, %v1561
    %v1564 = vtanh.pop %v1563
    %v1565 = vsub.f32 1.0, %v1551
    %1567 = vrot.lane.b32.xlu0 %v1564, 96
    %v1568 = vpop.permute.xlu0 %1567
    %v1570 = vmul.f32 %v1565, %v1568
    %v1571 = vmul.f32 %v1551, %v1342
    %v1572 = vadd.f32 %v1570, %v1571
    %v1574 = vrot.slane %v1572, 1
    %v1575 = vperm.slane %v1572, 0
    %v1576 = vperm.slane %v1574, 0
    %1577 = vrot.lane.b32.xlu0 %v1575, 96
    %v1578 = vpop.permute.xlu0 %1577
    %1579 = vrot.lane.b32.xlu0 %v1576, 96
    %v1580 = vpop.permute.xlu0 %1579
    %1583 = vst.msk [vmem:[#allocation4 + $0x5] sm:$0x1] %vm432, %v1578
    %1584 = vst.msk [vmem:[#allocation4 + $0xd] sm:$0x1] %vm432, %v1580
    %v1585 = vld [vmem:[%s0 + $0x6] sm:$0x1]
    %v1586 = vld [vmem:[%s0 + $0xe] sm:$0x1]
    %v1589 = vrot.slane %v1586, 7
    %v1590 = vsel %vm99, %v1589, %v1585
    %v1592 = vsel %vm106, %v1590, %v1572
    %v1593 = vpack.c.bf16 %v1592, %v1592
    %v1595 = vsel %vm136, %v1593, 0
    %1597 = vmatpush.bf16.msra.mxu0 0
    %1598 = vmatpush.bf16.msra.mxu0 0
    %1599 = vmatpush.bf16.msra.mxu0 0
    %1600 = vmatpush.bf16.msra.mxu0 0
    %1601 = vmatpush.bf16.msra.mxu0 %v131
    %1602 = vmatpush.bf16.msra.mxu0 %v130
    %1603 = vmatpush.bf16.msra.mxu0 %v129
    %1604 = vmatpush.bf16.msra.mxu0 %v128
    %1605 = vmatmul.bf16.gmra.mxu0 %v1595
    %v1606 = vpop.f32.mrf.mxu0
    %v1607 = vadd.f32 %v110, %v1606
    %v1608 = vpop.f32.mrf.mxu0
    %1609 = vdwg.mxu0
    %v1611 = vrot.slane %v1607, 1
    %v1612 = vperm.slane %v1607, 0
    %v1613 = vperm.slane %v1611, 0
    %v1616 = vadd.f32 %v60, %v1612
    %v1617 = vadd.f32 %v61, %v1613
    %v1618 = vtanh.pop %v1616
    %v1619 = vtanh.pop %v1617
    %v1620 = vmul.f32 %v1618, %v164
    %v1621 = vmul.f32 %v1619, %v164
    %v1622 = vsel %vm106, %v1620, 0.0
    %1623 = vadd.xlane.f32.xlu0 %v1622
    %v1624 = vpop.xlane.xlu0 %1623
    %v1625 = vsel %vm106, %v1621, 0.0
    %1626 = vadd.xlane.f32.xlu0 %v1625
    %v1627 = vpop.xlane.xlu0 %1626
    %v1628 = vadd.f32 %v1624, %v178
    %v1629 = vadd.f32 %v1627, %v178
    %v1632 = vperm.slane %v1628, %v185
    %v1633 = vperm.slane %v1629, %v185
    %v1634 = vsel %vm99, %v1633, %v1632
    %v1636 = vsel %vm190, %v1634, -inf
    %1637 = vmax.xlane.f32.xlu0 %v1636
    %v1638 = vpop.xlane.xlu0 %1637
    %v1640 = vperm.slane %v1638, 0
    %v1641 = vperm.slane %v1638, 1
    %v1644 = vsub.f32 %v1628, %v1640
    %v1645 = vsub.f32 %v1629, %v1641
    %v1646 = vmul.f32 %v1644, 1.442695
    %v1647 = vpow.pop %v1646
    %v1648 = vmul.f32 %v1645, 1.442695
    %v1649 = vpow.pop %v1648
    %1652 = vset.pattern.permute.xlu0 0
    %1653 = vperm.xlu0 %1652, %v1647
    %v1654 = vpop.permute.xlu0 %1653
    %1655 = vset.pattern.permute.xlu0 0
    %1656 = vperm.xlu0 %1655, %v1649
    %v1657 = vpop.permute.xlu0 %1656
    %v1658 = vperm.slane %v1654, %v185
    %v1659 = vperm.slane %v1657, %v185
    %v1660 = vsel %vm99, %v1659, %v1658
    %v1662 = vsel %vm190, %v1660, 0.0
    %1663 = vadd.xlane.f32.xlu0 %v1662
    %v1664 = vpop.xlane.xlu0 %1663
    %v1665 = vrcp.pop %v1664
    %v1667 = vperm.slane %v1665, 0
    %v1668 = vperm.slane %v1665, 1
    %v1671 = vmul.f32 %v1647, %v1667
    %v1672 = vmul.f32 %v1649, %v1668
    %1674 = vset.pattern.permute.xlu0 0
    %1675 = vperm.xlu0 %1674, %v1671
    %v1676 = vpop.permute.xlu0 %1675
    %1679 = vset.pattern.permute.xlu0 0
    %1680 = vperm.xlu0 %1679, %v1672
    %v1681 = vpop.permute.xlu0 %1680
    %v1683 = vmul.f32 %v1676, %v56
    %v1684 = vmul.f32 %v1681, %v57
    %v1685 = vsel %vm106, %v1683, 0.0
    %v1686 = vrot.slane %v1685, 4
    %v1687 = vadd.f32 %v1685, %v1686
    %v1688 = vrot.slane %v1687, 2
    %v1689 = vadd.f32 %v1687, %v1688
    %v1690 = vrot.slane %v1689, 1
    %v1691 = vadd.f32 %v1689, %v1690
    %v1692 = vsel %vm106, %v1684, 0.0
    %v1693 = vrot.slane %v1692, 4
    %v1694 = vadd.f32 %v1692, %v1693
    %v1695 = vrot.slane %v1694, 2
    %v1696 = vadd.f32 %v1694, %v1695
    %v1697 = vrot.slane %v1696, 1
    %v1698 = vadd.f32 %v1696, %v1697
    %v1701 = vsel %vm99, %v1698, %v1691
    %1702 = vrot.lane.b32.xlu0 %v1701, 32
    %v1703 = vpop.permute.xlu0 %1702
    %v1705 = vsel %vm106, %v1590, %v1703
    %v1706 = vpack.c.bf16 %v1705, %v1705
    %v1708 = vsel %vm136, %v1706, 0
    %1710 = vmatpush.bf16.msra.mxu0 0
    %1711 = vmatpush.bf16.msra.mxu0 0
    %1712 = vmatpush.bf16.msra.mxu0 0
    %1713 = vmatpush.bf16.msra.mxu0 0
    %1714 = vmatpush.bf16.msra.mxu0 %v284
    %1715 = vmatpush.bf16.msra.mxu0 %v283
    %1716 = vmatpush.bf16.msra.mxu0 %v282
    %1717 = vmatpush.bf16.msra.mxu0 %v281
    %1718 = vmatmul.bf16.gmra.mxu0 %v1708
    %v1719 = vpop.f32.mrf.mxu0
    %v1720 = vadd.f32 %v263, %v1719
    %v1721 = vpop.f32.mrf.mxu0
    %1722 = vdwg.mxu0
    %v1723 = vxor.u32 %v1720, 2147483648
    %v1724 = vmul.f32 %v1723, 1.442695
    %v1725 = vpow.pop %v1724
    %v1726 = vadd.f32 %v1725, 1.0
    %v1727 = vrcp.pop %v1726
    %v1728 = vmul.f32 %v1726, %v1727
    %v1729 = vsub.f32 1.0, %v1728
    %v1730 = vmul.f32 %v1727, %v1729
    %v1731 = vadd.f32 %v1727, %v1730
    %vm1732 = vweird.f32 %v1726
    %vm1733 = vweird.f32 %v1727
    %vm1734 = vmor %vm1732, %vm1733
    %v1735 = vsel %vm1734, %v1727, %v1731
    %v1736 = vand.u32 2147483647, %v1726
    %vm1737 = vcmp.eq.f32.partialorder %v1736, 8.507059e+37
    %v1738 = vand.u32 %v1726, 2147483648
    %v1739 = vor.u32 1.1754944e-38, %v1738
    %v1740 = vsel %vm1737, %v1739, %v1735
    %v1741 = vmul.f32 1.0, %v1740
    %v1743 = vmul.f32 %v1741, %v1701
    %v1744 = vsel %vm106, %v1743, %v1572
    %v1745 = vpack.c.bf16 %v1744, %v1744
    %v1747 = vsel %vm136, %v1745, 0
    %1749 = vmatpush.bf16.msra.mxu0 0
    %1750 = vmatpush.bf16.msra.mxu0 0
    %1751 = vmatpush.bf16.msra.mxu0 0
    %1752 = vmatpush.bf16.msra.mxu0 0
    %1753 = vmatpush.bf16.msra.mxu0 %v347
    %1754 = vmatpush.bf16.msra.mxu0 %v346
    %1755 = vmatpush.bf16.msra.mxu0 %v345
    %1756 = vmatpush.bf16.msra.mxu0 %v344
    %1757 = vmatmul.bf16.gmra.mxu0 %v1747
    %v1758 = vpop.f32.mrf.mxu0
    %v1759 = vadd.f32 0.0, %v1758
    %v1760 = vpop.f32.mrf.mxu0
    %1761 = vdwg.mxu0
    %v1762 = vadd.f32 %v1759, %v369
    %v1763 = vxor.u32 %v1762, 2147483648
    %v1764 = vmul.f32 %v1763, 1.442695
    %v1765 = vpow.pop %v1764
    %v1766 = vadd.f32 %v1765, 1.0
    %v1767 = vrcp.pop %v1766
    %v1768 = vmul.f32 %v1766, %v1767
    %v1769 = vsub.f32 1.0, %v1768
    %v1770 = vmul.f32 %v1767, %v1769
    %v1771 = vadd.f32 %v1767, %v1770
    %vm1772 = vweird.f32 %v1766
    %vm1773 = vweird.f32 %v1767
    %vm1774 = vmor %vm1772, %vm1773
    %v1775 = vsel %vm1774, %v1767, %v1771
    %v1776 = vand.u32 2147483647, %v1766
    %vm1777 = vcmp.eq.f32.partialorder %v1776, 8.507059e+37
    %v1778 = vand.u32 %v1766, 2147483648
    %v1779 = vor.u32 1.1754944e-38, %v1778
    %v1780 = vsel %vm1777, %v1779, %v1775
    %v1781 = vmul.f32 1.0, %v1780
    %v1782 = vadd.f32 %v1759, %v394
    %v1783 = vadd.f32 %v1759, %v400
    %1785 = vrot.lane.b32.xlu0 %v1783, 32
    %v1786 = vpop.permute.xlu0 %1785
    %v1788 = vmul.f32 %v1781, %v1786
    %1790 = vrot.lane.b32.xlu0 %v1788, 64
    %v1791 = vpop.permute.xlu0 %1790
    %v1793 = vadd.f32 %v1782, %v1791
    %v1794 = vtanh.pop %v1793
    %v1795 = vsub.f32 1.0, %v1781
    %1797 = vrot.lane.b32.xlu0 %v1794, 96
    %v1798 = vpop.permute.xlu0 %1797
    %v1800 = vmul.f32 %v1795, %v1798
    %v1801 = vmul.f32 %v1781, %v1572
    %v1802 = vadd.f32 %v1800, %v1801
    %v1804 = vrot.slane %v1802, 1
    %v1805 = vperm.slane %v1802, 0
    %v1806 = vperm.slane %v1804, 0
    %1807 = vrot.lane.b32.xlu0 %v1805, 96
    %v1808 = vpop.permute.xlu0 %1807
    %1809 = vrot.lane.b32.xlu0 %v1806, 96
    %v1810 = vpop.permute.xlu0 %1809
    %1813 = vst.msk [vmem:[#allocation4 + $0x6] sm:$0x1] %vm432, %v1808
    %1814 = vst.msk [vmem:[#allocation4 + $0xe] sm:$0x1] %vm432, %v1810
    %v1815 = vld [vmem:[%s0 + $0x7] sm:$0x1]
    %v1816 = vld [vmem:[%s0 + $0xf] sm:$0x1]
    %v1819 = vrot.slane %v1816, 7
    %v1820 = vsel %vm99, %v1819, %v1815
    %v1822 = vsel %vm106, %v1820, %v1802
    %v1823 = vpack.c.bf16 %v1822, %v1822
    %v1825 = vsel %vm136, %v1823, 0
    %1827 = vmatpush.bf16.msra.mxu0 0
    %1828 = vmatpush.bf16.msra.mxu0 0
    %1829 = vmatpush.bf16.msra.mxu0 0
    %1830 = vmatpush.bf16.msra.mxu0 0
    %1831 = vmatpush.bf16.msra.mxu0 %v131
    %1832 = vmatpush.bf16.msra.mxu0 %v130
    %1833 = vmatpush.bf16.msra.mxu0 %v129
    %1834 = vmatpush.bf16.msra.mxu0 %v128
    %1835 = vmatmul.bf16.gmra.mxu0 %v1825
    %v1836 = vpop.f32.mrf.mxu0
    %v1837 = vadd.f32 %v110, %v1836
    %v1838 = vpop.f32.mrf.mxu0
    %1839 = vdwg.mxu0
    %v1841 = vrot.slane %v1837, 1
    %v1842 = vperm.slane %v1837, 0
    %v1843 = vperm.slane %v1841, 0
    %v1846 = vadd.f32 %v60, %v1842
    %v1847 = vadd.f32 %v61, %v1843
    %v1848 = vtanh.pop %v1846
    %v1849 = vtanh.pop %v1847
    %v1850 = vmul.f32 %v1848, %v164
    %v1851 = vmul.f32 %v1849, %v164
    %v1852 = vsel %vm106, %v1850, 0.0
    %1853 = vadd.xlane.f32.xlu0 %v1852
    %v1854 = vpop.xlane.xlu0 %1853
    %v1855 = vsel %vm106, %v1851, 0.0
    %1856 = vadd.xlane.f32.xlu0 %v1855
    %v1857 = vpop.xlane.xlu0 %1856
    %v1858 = vadd.f32 %v1854, %v178
    %v1859 = vadd.f32 %v1857, %v178
    %v1862 = vperm.slane %v1858, %v185
    %v1863 = vperm.slane %v1859, %v185
    %v1864 = vsel %vm99, %v1863, %v1862
    %v1866 = vsel %vm190, %v1864, -inf
    %1867 = vmax.xlane.f32.xlu0 %v1866
    %v1868 = vpop.xlane.xlu0 %1867
    %v1870 = vperm.slane %v1868, 0
    %v1871 = vperm.slane %v1868, 1
    %v1874 = vsub.f32 %v1858, %v1870
    %v1875 = vsub.f32 %v1859, %v1871
    %v1876 = vmul.f32 %v1874, 1.442695
    %v1877 = vpow.pop %v1876
    %v1878 = vmul.f32 %v1875, 1.442695
    %v1879 = vpow.pop %v1878
    %1882 = vset.pattern.permute.xlu0 0
    %1883 = vperm.xlu0 %1882, %v1877
    %v1884 = vpop.permute.xlu0 %1883
    %1885 = vset.pattern.permute.xlu0 0
    %1886 = vperm.xlu0 %1885, %v1879
    %v1887 = vpop.permute.xlu0 %1886
    %v1888 = vperm.slane %v1884, %v185
    %v1889 = vperm.slane %v1887, %v185
    %v1890 = vsel %vm99, %v1889, %v1888
    %v1892 = vsel %vm190, %v1890, 0.0
    %1893 = vadd.xlane.f32.xlu0 %v1892
    %v1894 = vpop.xlane.xlu0 %1893
    %v1895 = vrcp.pop %v1894
    %v1897 = vperm.slane %v1895, 0
    %v1898 = vperm.slane %v1895, 1
    %v1901 = vmul.f32 %v1877, %v1897
    %v1902 = vmul.f32 %v1879, %v1898
    %1904 = vset.pattern.permute.xlu0 0
    %1905 = vperm.xlu0 %1904, %v1901
    %v1906 = vpop.permute.xlu0 %1905
    %1909 = vset.pattern.permute.xlu0 0
    %1910 = vperm.xlu0 %1909, %v1902
    %v1911 = vpop.permute.xlu0 %1910
    %v1913 = vmul.f32 %v1906, %v56
    %v1914 = vmul.f32 %v1911, %v57
    %v1915 = vsel %vm106, %v1913, 0.0
    %v1916 = vrot.slane %v1915, 4
    %v1917 = vadd.f32 %v1915, %v1916
    %v1918 = vrot.slane %v1917, 2
    %v1919 = vadd.f32 %v1917, %v1918
    %v1920 = vrot.slane %v1919, 1
    %v1921 = vadd.f32 %v1919, %v1920
    %v1922 = vsel %vm106, %v1914, 0.0
    %v1923 = vrot.slane %v1922, 4
    %v1924 = vadd.f32 %v1922, %v1923
    %v1925 = vrot.slane %v1924, 2
    %v1926 = vadd.f32 %v1924, %v1925
    %v1927 = vrot.slane %v1926, 1
    %v1928 = vadd.f32 %v1926, %v1927
    %v1931 = vsel %vm99, %v1928, %v1921
    %1932 = vrot.lane.b32.xlu0 %v1931, 32
    %v1933 = vpop.permute.xlu0 %1932
    %v1935 = vsel %vm106, %v1820, %v1933
    %v1936 = vpack.c.bf16 %v1935, %v1935
    %v1938 = vsel %vm136, %v1936, 0
    %1940 = vmatpush.bf16.msra.mxu0 0
    %1941 = vmatpush.bf16.msra.mxu0 0
    %1942 = vmatpush.bf16.msra.mxu0 0
    %1943 = vmatpush.bf16.msra.mxu0 0
    %1944 = vmatpush.bf16.msra.mxu0 %v284
    %1945 = vmatpush.bf16.msra.mxu0 %v283
    %1946 = vmatpush.bf16.msra.mxu0 %v282
    %1947 = vmatpush.bf16.msra.mxu0 %v281
    %1948 = vmatmul.bf16.gmra.mxu0 %v1938
    %v1949 = vpop.f32.mrf.mxu0
    %v1950 = vadd.f32 %v263, %v1949
    %v1951 = vpop.f32.mrf.mxu0
    %1952 = vdwg.mxu0
    %v1953 = vxor.u32 %v1950, 2147483648
    %v1954 = vmul.f32 %v1953, 1.442695
    %v1955 = vpow.pop %v1954
    %v1956 = vadd.f32 %v1955, 1.0
    %v1957 = vrcp.pop %v1956
    %v1958 = vmul.f32 %v1956, %v1957
    %v1959 = vsub.f32 1.0, %v1958
    %v1960 = vmul.f32 %v1957, %v1959
    %v1961 = vadd.f32 %v1957, %v1960
    %vm1962 = vweird.f32 %v1956
    %vm1963 = vweird.f32 %v1957
    %vm1964 = vmor %vm1962, %vm1963
    %v1965 = vsel %vm1964, %v1957, %v1961
    %v1966 = vand.u32 2147483647, %v1956
    %vm1967 = vcmp.eq.f32.partialorder %v1966, 8.507059e+37
    %v1968 = vand.u32 %v1956, 2147483648
    %v1969 = vor.u32 1.1754944e-38, %v1968
    %v1970 = vsel %vm1967, %v1969, %v1965
    %v1971 = vmul.f32 1.0, %v1970
    %v1973 = vmul.f32 %v1971, %v1931
    %v1974 = vsel %vm106, %v1973, %v1802
    %v1975 = vpack.c.bf16 %v1974, %v1974
    %v1977 = vsel %vm136, %v1975, 0
    %1979 = vmatpush.bf16.msra.mxu0 0
    %1980 = vmatpush.bf16.msra.mxu0 0
    %1981 = vmatpush.bf16.msra.mxu0 0
    %1982 = vmatpush.bf16.msra.mxu0 0
    %1983 = vmatpush.bf16.msra.mxu0 %v347
    %1984 = vmatpush.bf16.msra.mxu0 %v346
    %1985 = vmatpush.bf16.msra.mxu0 %v345
    %1986 = vmatpush.bf16.msra.mxu0 %v344
    %1987 = vmatmul.bf16.gmra.mxu0 %v1977
    %v1988 = vpop.f32.mrf.mxu0
    %v1989 = vadd.f32 0.0, %v1988
    %v1990 = vpop.f32.mrf.mxu0
    %1991 = vdwg.mxu0
    %v1992 = vadd.f32 %v1989, %v369
    %v1993 = vxor.u32 %v1992, 2147483648
    %v1994 = vmul.f32 %v1993, 1.442695
    %v1995 = vpow.pop %v1994
    %v1996 = vadd.f32 %v1995, 1.0
    %v1997 = vrcp.pop %v1996
    %v1998 = vmul.f32 %v1996, %v1997
    %v1999 = vsub.f32 1.0, %v1998
    %v2000 = vmul.f32 %v1997, %v1999
    %v2001 = vadd.f32 %v1997, %v2000
    %vm2002 = vweird.f32 %v1996
    %vm2003 = vweird.f32 %v1997
    %vm2004 = vmor %vm2002, %vm2003
    %v2005 = vsel %vm2004, %v1997, %v2001
    %v2006 = vand.u32 2147483647, %v1996
    %vm2007 = vcmp.eq.f32.partialorder %v2006, 8.507059e+37
    %v2008 = vand.u32 %v1996, 2147483648
    %v2009 = vor.u32 1.1754944e-38, %v2008
    %v2010 = vsel %vm2007, %v2009, %v2005
    %v2011 = vmul.f32 1.0, %v2010
    %v2012 = vadd.f32 %v1989, %v394
    %v2013 = vadd.f32 %v1989, %v400
    %2015 = vrot.lane.b32.xlu0 %v2013, 32
    %v2016 = vpop.permute.xlu0 %2015
    %v2018 = vmul.f32 %v2011, %v2016
    %2020 = vrot.lane.b32.xlu0 %v2018, 64
    %v2021 = vpop.permute.xlu0 %2020
    %v2023 = vadd.f32 %v2012, %v2021
    %v2024 = vtanh.pop %v2023
    %v2025 = vsub.f32 1.0, %v2011
    %2027 = vrot.lane.b32.xlu0 %v2024, 96
    %v2028 = vpop.permute.xlu0 %2027
    %v2030 = vmul.f32 %v2025, %v2028
    %v2031 = vmul.f32 %v2011, %v1802
    %v2032 = vadd.f32 %v2030, %v2031
    %v2034 = vrot.slane %v2032, 1
    %v2035 = vperm.slane %v2032, 0
    %v2036 = vperm.slane %v2034, 0
    %2037 = vrot.lane.b32.xlu0 %v2035, 96
    %v2038 = vpop.permute.xlu0 %2037
    %2039 = vrot.lane.b32.xlu0 %v2036, 96
    %v2040 = vpop.permute.xlu0 %2039
    %2043 = vst.msk [vmem:[#allocation4 + $0x7] sm:$0x1] %vm432, %v2038
    %2044 = vst.msk [vmem:[#allocation4 + $0xf] sm:$0x1] %vm432, %v2040
    %2045 = vrot.lane.b32.xlu0 %v2032, 96
    %v2046 = vpop.permute.xlu0 %2045
    %vm2048 = vcmask 254976
    %2049 = vst.msk [vmem:[#allocation2] sm:$0x3] %vm2048, %v2046
    // Predicated region
    $region58: #{tpu_custom_call.1} parent=1 // pred_check
      _
    $region59: #{tpu_custom_call.1} parent=1 // pred_check_branch
      %2051 = sbr.rel (0) target = $region61
    $region60: #{tpu_custom_call.1} parent=1 // pred_region
      %2053 = vsyncadd [#allocation5], 0
      %s2054 = sshll.u32 [#allocation4], 4
      %s2055 = int_to_ptr.vmem [resolvable:$true] %s2054
      %s2056 = sshll.u32 %s13, 4
      %s2057 = int_to_ptr.hbm [resolvable:$true] %s2056
      %2062 = dma.vmem_to_hbm [thread:$0]  %s2055, 256, %s2057, [#allocation5], 128, 128, 8
    $region61: #{tpu_custom_call.1} parent=1 // pred_fallthru
      _
    // Predicated region
    $region62: #{tpu_custom_call.1} parent=1 // pred_check
      _
    $region63: #{tpu_custom_call.1} parent=1 // pred_check_branch
      %2064 = sbr.rel (0) target = $region65
    $region64: #{tpu_custom_call.1} parent=1 // pred_region
      %2066 = dma.done [#allocation5], 256
    $region65: #{tpu_custom_call.1} parent=1 // pred_fallthru
      _
    %2067 = vsyncpa [#allocation5], 1

</llo_original>
